<compile_context>
chip_gen: v7x
topology: tpu7x:2x2x1
jax: 0.10.0
libtpu: 0.0.40
codegen_flags: <defaults>
</compile_context>

<pallas_src>
import functools

import jax
import jax.numpy as jnp
from jax.experimental import pallas as pl
from jax.experimental.pallas import tpu as pltpu


# ---------------------------------------------------------------------------
# Fused kernel: one batch element per grid step.
# ---------------------------------------------------------------------------
def _conv_encoder_kernel(x_ref, w_ref, b_ref, o_ref, *,
                         kernel_size, stride, l_full, pool, n_out):
    x = x_ref[0]            # (C_in, L_pad)
    b = b_ref[...]          # (C_out, 1)
    c_out = o_ref.shape[1]

    # ---- stride-1 convolution: K shifted MXU matmuls, f32 accumulation ----
    acc = jnp.zeros((c_out, l_full), jnp.float32)
    for k in range(kernel_size):                       # K is small, unrolled
        w_k = w_ref[k]                                 # (C_out, C_in)
        x_k = x[:, k:k + l_full]                       # contiguous static slice
        acc = acc + jnp.dot(w_k, x_k,
                            preferred_element_type=jnp.float32,
                            precision=jax.lax.Precision.HIGHEST)

    # ---- bias + ReLU -------------------------------------------------------
    r = jnp.maximum(acc + b, 0.0)                      # (C_out, l_full)
    # TODO(synk): nn.Dropout is identity in eval mode; training-mode stochastic
    # dropout (pltpu.prng_seed / pltpu.prng_random_bits) is not implemented.

    # ---- max over pooling window (contiguous shifted slices) ---------------
    dec = pool * stride                                # combined decimation
    m_len = (n_out - 1) * dec + 1
    m = r[:, 0:m_len]
    for p in range(1, pool):
        m = jnp.maximum(m, r[:, p * stride:p * stride + m_len])

    # ---- decimate by `dec` with a one-hot matmul (exact gather on the MXU) -
    if dec == 1:
        out = m
    else:
        rows = jax.lax.broadcasted_iota(jnp.int32, (m_len, n_out), 0)
        cols = jax.lax.broadcasted_iota(jnp.int32, (m_len, n_out), 1)
        sel = (rows == cols * dec).astype(jnp.float32)
        out = jnp.dot(m, sel,
                      preferred_element_type=jnp.float32,
                      precision=jax.lax.Precision.HIGHEST)

    o_ref[0] = out.astype(o_ref.dtype)


# ---------------------------------------------------------------------------
# Jitted wrapper (pads the input once, launches one fused pallas_call).
# ---------------------------------------------------------------------------
@functools.partial(
    jax.jit,
    static_argnames=("kernel_size", "stride", "pad_left", "pad_right",
                     "pool_kernel_size", "apply_pool"))
def conv_encoder_forward(x, w_t, b_col, *, kernel_size, stride, pad_left,
                         pad_right, pool_kernel_size, apply_pool):
    """x: (B, C_in, L);  w_t: (K, C_out, C_in);  b_col: (C_out, 1)."""
    B, C_in, L = x.shape
    K, C_out, _ = w_t.shape
    assert K == kernel_size

    x_pad = jnp.pad(x, ((0, 0), (0, 0), (pad_left, pad_right)))
    L_padded = L + pad_left + pad_right
    l_full = L_padded - K + 1                   # stride-1 conv output length
    l_out = (L_padded - K) // stride + 1        # strided conv output length
    pool = pool_kernel_size if apply_pool else 1
    n_out = l_out // pool                       # final output length

    kernel = functools.partial(
        _conv_encoder_kernel,
        kernel_size=K, stride=stride, l_full=l_full, pool=pool, n_out=n_out)

    # NOTE: for long sequences one would additionally tile the length axis
    # (with a (K-1)-halo on the input block); at these sizes one block per
    # batch element fits VMEM comfortably.
    return pl.pallas_call(
        kernel,
        out_shape=jax.ShapeDtypeStruct((B, C_out, n_out), x.dtype),
        grid=(B,),
        in_specs=[
            pl.BlockSpec((1, C_in, L_padded), lambda i: (i, 0, 0)),  # activations
            pl.BlockSpec((K, C_out, C_in), lambda i: (0, 0, 0)),     # weights (VMEM-resident)
            pl.BlockSpec((C_out, 1), lambda i: (0, 0)),              # bias (VMEM-resident)
        ],
        out_specs=pl.BlockSpec((1, C_out, n_out), lambda i: (i, 0, 0)),
        compiler_params=pltpu.CompilerParams(
            dimension_semantics=("parallel",)),
    )(x_pad, w_t, b_col)


# ---------------------------------------------------------------------------
# Pure-JAX reference (PyTorch semantics, eval mode) for correctness checking.
# ---------------------------------------------------------------------------
def conv_encoder_reference(x, w, b, *, stride, pad_left, pad_right,
                           pool_kernel_size, apply_pool):
    y = jax.lax.conv_general_dilated(
        x, w, window_strides=(stride,), padding=[(pad_left, pad_right)],
        dimension_numbers=("NCH", "OIH", "NCH"),
        precision=jax.lax.Precision.HIGHEST)
    y = y + b[None, :, None]
    y = jnp.maximum(y, 0.0)
    if apply_pool:
        y = jax.lax.reduce_window(
            y, -jnp.inf, jax.lax.max,
            (1, 1, pool_kernel_size), (1, 1, pool_kernel_size), "VALID")
    return y


if __name__ == "__main__":
    key = jax.random.PRNGKey(0)
    kx, kw, kb = jax.random.split(key, 3)

    # Small shapes consistent with the module: batch=2, channels 4 -> 8, seq=16.
    B, C_in, L = 2, 4, 16
    C_out, K, stride, pad, pool = 8, 3, 1, 1, 2

    x = jax.random.normal(kx, (B, C_in, L), jnp.float32)
    bound = 1.0 / float(C_in * K) ** 0.5
    w = jax.random.uniform(kw, (C_out, C_in, K), jnp.float32, -bound, bound)
    b = jax.random.uniform(kb, (C_out,), jnp.float32, -bound, bound)

    # One-time (init) layout prep — kept out of the jitted hot path.
    w_t = jnp.transpose(w, (2, 0, 1))       # (K, C_out, C_in)
    b_col = b.reshape(C_out, 1)             # (C_out, 1)

    # Config 1: conv(k=3, s=1, p=1) + ReLU + maxpool(2)   [ignore_pool=False]
    out = conv_encoder_forward(
        x, w_t, b_col, kernel_size=K, stride=stride, pad_left=pad,
        pad_right=pad, pool_kernel_size=pool, apply_pool=True)
    out = jax.block_until_ready(out)
    ref = conv_encoder_reference(
        x, w, b, stride=stride, pad_left=pad, pad_right=pad,
        pool_kernel_size=pool, apply_pool=True)
    assert out.shape == ref.shape, (out.shape, ref.shape)
    assert jnp.allclose(out, ref, atol=1e-4, rtol=1e-4), "mismatch (pooled config)"

    # Config 2: conv(k=3, s=2, p=1) + ReLU, no pooling     [ignore_pool=True]
    out2 = conv_encoder_forward(
        x, w_t, b_col, kernel_size=K, stride=2, pad_left=pad,
        pad_right=pad, pool_kernel_size=pool, apply_pool=False)
    out2 = jax.block_until_ready(out2)
    ref2 = conv_encoder_reference(
        x, w, b, stride=2, pad_left=pad, pad_right=pad,
        pool_kernel_size=pool, apply_pool=False)
    assert out2.shape == ref2.shape, (out2.shape, ref2.shape)
    assert jnp.allclose(out2, ref2, atol=1e-4, rtol=1e-4), "mismatch (no-pool config)"

    print("KERNEL_OK")
</pallas_src>

<mosaic_0001>
module attributes {stable_mosaic.version = 11 : i64} {
  func.func @_conv_encoder_kernel(%arg0: i32, %arg1: memref<1x4x18xf32, #tpu.memory_space<vmem>>, %arg2: memref<3x8x4xf32, #tpu.memory_space<vmem>>, %arg3: memref<8x1xf32, #tpu.memory_space<vmem>>, %arg4: memref<1x8x8xf32, #tpu.memory_space<vmem>>) attributes {dimension_semantics = [#tpu.dimension_semantics<parallel>], iteration_bounds = array<i64: 2>, scalar_prefetch = 0 : i64, scratch_operands = 0 : i64, tpu.core_type = #tpu.core_type<tc>, window_params = [{transform_indices = @transform_0, window_bounds = array<i64: 1, 4, 18>}, {pipeline_mode = #tpu.pipeline_mode<synchronous>, transform_indices = @transform_1, window_bounds = array<i64: 3, 8, 4>}, {pipeline_mode = #tpu.pipeline_mode<synchronous>, transform_indices = @transform_2, window_bounds = array<i64: 8, 1>}, {transform_indices = @transform_3, window_bounds = array<i64: 1, 8, 8>}]} {
    %c0 = arith.constant 0 : index
    %c0_0 = arith.constant 0 : index
    %c0_1 = arith.constant 0 : index
    %0 = vector.load %arg1[%c0, %c0_0, %c0_1] : memref<1x4x18xf32, #tpu.memory_space<vmem>>, vector<1x4x18xf32>
    %1 = vector.shape_cast %0 : vector<1x4x18xf32> to vector<4x18xf32>
    %c0_2 = arith.constant 0 : index
    %c0_3 = arith.constant 0 : index
    %2 = vector.load %arg3[%c0_2, %c0_3] : memref<8x1xf32, #tpu.memory_space<vmem>>, vector<8x1xf32>
    %cst = arith.constant 0.000000e+00 : f32
    %3 = vector.broadcast %cst : f32 to vector<8x16xf32>
    %c0_4 = arith.constant 0 : index
    %c0_5 = arith.constant 0 : index
    %c0_6 = arith.constant 0 : index
    %4 = vector.load %arg2[%c0_4, %c0_5, %c0_6] : memref<3x8x4xf32, #tpu.memory_space<vmem>>, vector<1x8x4xf32>
    %5 = vector.shape_cast %4 : vector<1x8x4xf32> to vector<8x4xf32>
    %6 = vector.extract_strided_slice %1 {offsets = [0, 0], sizes = [4, 16], strides = [1, 1]} : vector<4x18xf32> to vector<4x16xf32>
    %cst_7 = arith.constant dense<0.000000e+00> : vector<8x16xf32>
    %7 = tpu.matmul %5, %6, %cst_7 {dimension_numbers = #tpu.dot_dimension_numbers<[1], [0], [0], [1], [0, 0, 1, 1], [], []>, precision = #tpu.contract_precision<fp32>} : vector<8x4xf32>, vector<4x16xf32>, vector<8x16xf32> -> vector<8x16xf32>
    %8 = arith.addf %3, %7 : vector<8x16xf32>
    %c1 = arith.constant 1 : index
    %c0_8 = arith.constant 0 : index
    %c0_9 = arith.constant 0 : index
    %9 = vector.load %arg2[%c1, %c0_8, %c0_9] : memref<3x8x4xf32, #tpu.memory_space<vmem>>, vector<1x8x4xf32>
    %10 = vector.shape_cast %9 : vector<1x8x4xf32> to vector<8x4xf32>
    %11 = vector.extract_strided_slice %1 {offsets = [0, 1], sizes = [4, 16], strides = [1, 1]} : vector<4x18xf32> to vector<4x16xf32>
    %cst_10 = arith.constant dense<0.000000e+00> : vector<8x16xf32>
    %12 = tpu.matmul %10, %11, %cst_10 {dimension_numbers = #tpu.dot_dimension_numbers<[1], [0], [0], [1], [0, 0, 1, 1], [], []>, precision = #tpu.contract_precision<fp32>} : vector<8x4xf32>, vector<4x16xf32>, vector<8x16xf32> -> vector<8x16xf32>
    %13 = arith.addf %8, %12 : vector<8x16xf32>
    %c2 = arith.constant 2 : index
    %c0_11 = arith.constant 0 : index
    %c0_12 = arith.constant 0 : index
    %14 = vector.load %arg2[%c2, %c0_11, %c0_12] : memref<3x8x4xf32, #tpu.memory_space<vmem>>, vector<1x8x4xf32>
    %15 = vector.shape_cast %14 : vector<1x8x4xf32> to vector<8x4xf32>
    %16 = vector.extract_strided_slice %1 {offsets = [0, 2], sizes = [4, 16], strides = [1, 1]} : vector<4x18xf32> to vector<4x16xf32>
    %cst_13 = arith.constant dense<0.000000e+00> : vector<8x16xf32>
    %17 = tpu.matmul %15, %16, %cst_13 {dimension_numbers = #tpu.dot_dimension_numbers<[1], [0], [0], [1], [0, 0, 1, 1], [], []>, precision = #tpu.contract_precision<fp32>} : vector<8x4xf32>, vector<4x16xf32>, vector<8x16xf32> -> vector<8x16xf32>
    %18 = arith.addf %13, %17 : vector<8x16xf32>
    %19 = vector.broadcast %2 : vector<8x1xf32> to vector<8x16xf32>
    %20 = arith.addf %18, %19 : vector<8x16xf32>
    %cst_14 = arith.constant 0.000000e+00 : f32
    %21 = vector.broadcast %cst_14 : f32 to vector<8x16xf32>
    %22 = arith.maximumf %20, %21 : vector<8x16xf32>
    %23 = vector.extract_strided_slice %22 {offsets = [0, 0], sizes = [8, 15], strides = [1, 1]} : vector<8x16xf32> to vector<8x15xf32>
    %24 = vector.extract_strided_slice %22 {offsets = [0, 1], sizes = [8, 15], strides = [1, 1]} : vector<8x16xf32> to vector<8x15xf32>
    %25 = arith.maximumf %23, %24 : vector<8x15xf32>
    %26 = tpu.iota {dimensions = array<i32: 0>} : vector<15x8xi32>
    %27 = tpu.iota {dimensions = array<i32: 1>} : vector<15x8xi32>
    %c2_i32 = arith.constant 2 : i32
    %28 = vector.broadcast %c2_i32 : i32 to vector<15x8xi32>
    %29 = arith.muli %27, %28 : vector<15x8xi32>
    %30 = arith.cmpi eq, %26, %29 : vector<15x8xi32>
    %31 = arith.extui %30 : vector<15x8xi1> to vector<15x8xi32>
    %32 = arith.sitofp %31 : vector<15x8xi32> to vector<15x8xf32>
    %cst_15 = arith.constant dense<0.000000e+00> : vector<8x8xf32>
    %33 = tpu.matmul %25, %32, %cst_15 {dimension_numbers = #tpu.dot_dimension_numbers<[1], [0], [0], [1], [0, 0, 1, 1], [], []>, precision = #tpu.contract_precision<fp32>} : vector<8x15xf32>, vector<15x8xf32>, vector<8x8xf32> -> vector<8x8xf32>
    %c0_16 = arith.constant 0 : index
    %c0_17 = arith.constant 0 : index
    %c0_18 = arith.constant 0 : index
    %34 = vector.load %arg4[%c0_16, %c0_17, %c0_18] : memref<1x8x8xf32, #tpu.memory_space<vmem>>, vector<1x8x8xf32>
    %35 = vector.shape_cast %34 : vector<1x8x8xf32> to vector<8x8xf32>
    %36 = vector.shape_cast %33 : vector<8x8xf32> to vector<1x8x8xf32>
    tpu.vector_store %arg4[%c0_16, %c0_17, %c0_18], %36 {strides = array<i32>} : memref<1x8x8xf32, #tpu.memory_space<vmem>>, vector<1x8x8xf32>,
    return
  }
  func.func @transform_0(%arg0: i32) -> (i32, i32, i32) {
    %c0_i32 = arith.constant 0 : i32
    %c0_i32_0 = arith.constant 0 : i32
    %c0_i32_1 = arith.constant 0 : i32
    return %arg0, %c0_i32, %c0_i32_0 : i32, i32, i32
  }
  func.func @transform_1(%arg0: i32) -> (i32, i32, i32) {
    %c0_i32 = arith.constant 0 : i32
    %c0_i32_0 = arith.constant 0 : i32
    %c0_i32_1 = arith.constant 0 : i32
    %c0_i32_2 = arith.constant 0 : i32
    return %c0_i32, %c0_i32_0, %c0_i32_1 : i32, i32, i32
  }
  func.func @transform_2(%arg0: i32) -> (i32, i32) {
    %c0_i32 = arith.constant 0 : i32
    %c0_i32_0 = arith.constant 0 : i32
    %c0_i32_1 = arith.constant 0 : i32
    return %c0_i32, %c0_i32_0 : i32, i32
  }
  func.func @transform_3(%arg0: i32) -> (i32, i32, i32) {
    %c0_i32 = arith.constant 0 : i32
    %c0_i32_0 = arith.constant 0 : i32
    %c0_i32_1 = arith.constant 0 : i32
    return %arg0, %c0_i32, %c0_i32_0 : i32, i32, i32
  }
}

</mosaic_0001>

<llo_original>
// kernel: conv_encoder_forward.1
$region0: #{conv_encoder_forward.1}
  #allocation0 [shape = 'u32[]', space=smem, size = 0x4, offset = 0x4, fixed_abs, tag = 'smem constant byte address 0x4 - core index']
  #allocation1 [shape = 'u32[144,128]{1,0:T(1,128)}', space=vmem, size = 0x12000, scoped, tag = 'internal scratch']
  %s0 = inlined_call_operand.vmem [shape: f32[2,4,18], index: 0, kind: input, shape index: {}]
  %s1 = inlined_call_operand.vmem [shape: f32[3,8,4], index: 1, kind: input, shape index: {}]
  %s2 = inlined_call_operand.vmem [shape: f32[8,1], index: 2, kind: input, shape index: {}]
  %s3 = inlined_call_operand.hbm [shape: f32[2,8,8], index: 3, kind: output, shape index: {}]
  %s4 = sld [smem:[#allocation0]]
  $region45: #{conv_encoder_forward.1} parent=0
    _
  %s6 = ssub.s32 1, %s4
  %s7 = scalar_select 0, %s6, %s4
  $region1: #{conv_encoder_forward.1} parent=0
    #allocation2 [shape = 'u8[8192]{0}', space=vmem, size = 0x2000, scoped, tag = 'output window, operand 0']
    #allocation3 [shape = 's32[2]{0}', space=sflag, size = 0x8, scoped, tag = 'scoped memory for conv_encoder_forward.1']
    %8 = vsyncpa [#allocation3], 0
    %s9 = scalar_lea.sflag [#allocation3], 1
    %10 = vsyncpa %s9, 0
    loop: start=0, step=1, limit=4
    $region2: #{conv_encoder_forward.1} parent=1 // loop_pre_header
      _
    $region3: #{conv_encoder_forward.1} parent=1 // loop_header
      %s12 = sphi 0, %s16
      %p13 = scmp.ge.s32.totalorder %s12, 4
      %s22 = sphi 0, %s24
      %s25 = sphi 0, %s22
      %s26 = sphi 0, %s25
      %s42 = sphi 0, %s26
      %s46 = sphi 0, %s46
      %s48 = sphi 0, %s46
      %s49 = sphi 0, %s48
      %s63 = sphi 0, %s49
      %s67 = sphi 0, %s67
      %s69 = sphi 0, %s67
      %s70 = sphi 0, %s69
      %s84 = sphi 0, %s70
      %s90 = sphi 0, %s92
      %s93 = sphi 0, %s90
      %s94 = sphi 0, %s93
      %s110 = sphi 0, %s94
    $region4: #{conv_encoder_forward.1} parent=1 // loop_header_branch
      %15 = sbr.rel (%p13) target = $region8
    $region5: #{conv_encoder_forward.1} parent=1 // loop_body
      %s17 = ssub.s32 %s12, 1
      %s18 = ssub.s32 %s12, 2
      %s19 = sadd.s32 %s12, 1
      %s20 = ssub.s32 %s12, %s19
      %p21 = scmp.eq.s32.totalorder %s20, 0
      %s23 = sadd.s32 %s22, 1
      %s24 = scalar_select %p21, %s22, %s23
      %p27 = pneg %p21
      %p28 = scmp.eq.s32.totalorder %s12, 1
      %p29 = por %p27, %p28
      %p30 = scmp.ne.s32.totalorder %s22, %s25
      %p31 = scmp.eq.s32.totalorder %s12, 0
      %p32 = por %p30, %p31
      %p33 = scmp.ne.s32.totalorder %s22, %s25
      %p34 = scmp.eq.s32.totalorder %s17, 1
      %p35 = por %p33, %p34
      %p36 = scmp.ne.s32.totalorder %s25, %s26
      %p37 = scmp.eq.s32.totalorder %s17, 0
      %p38 = por %p36, %p37
      %p39 = scmp.ne.s32.totalorder %s25, %s26
      %p40 = scmp.eq.s32.totalorder %s18, 1
      %p41 = por %p39, %p40
      %p43 = scmp.ne.s32.totalorder %s26, %s42
      %p44 = scmp.eq.s32.totalorder %s18, 0
      %p45 = por %p43, %p44
      %s47 = sadd.s32 %s46, 1
      %p50 = scmp.eq.s32.totalorder %s12, 1
      %p51 = scmp.ne.s32.totalorder %s46, %s48
      %p52 = scmp.eq.s32.totalorder %s12, 0
      %p53 = por %p51, %p52
      %p54 = scmp.ne.s32.totalorder %s46, %s48
      %p55 = scmp.eq.s32.totalorder %s17, 1
      %p56 = por %p54, %p55
      %p57 = scmp.ne.s32.totalorder %s48, %s49
      %p58 = scmp.eq.s32.totalorder %s17, 0
      %p59 = por %p57, %p58
      %p60 = scmp.ne.s32.totalorder %s48, %s49
      %p61 = scmp.eq.s32.totalorder %s18, 1
      %p62 = por %p60, %p61
      %p64 = scmp.ne.s32.totalorder %s49, %s63
      %p65 = scmp.eq.s32.totalorder %s18, 0
      %p66 = por %p64, %p65
      %s68 = sadd.s32 %s67, 1
      %p71 = scmp.eq.s32.totalorder %s12, 1
      %p72 = scmp.ne.s32.totalorder %s67, %s69
      %p73 = scmp.eq.s32.totalorder %s12, 0
      %p74 = por %p72, %p73
      %p75 = scmp.ne.s32.totalorder %s67, %s69
      %p76 = scmp.eq.s32.totalorder %s17, 1
      %p77 = por %p75, %p76
      %p78 = scmp.ne.s32.totalorder %s69, %s70
      %p79 = scmp.eq.s32.totalorder %s17, 0
      %p80 = por %p78, %p79
      %p81 = scmp.ne.s32.totalorder %s69, %s70
      %p82 = scmp.eq.s32.totalorder %s18, 1
      %p83 = por %p81, %p82
      %p85 = scmp.ne.s32.totalorder %s70, %s84
      %p86 = scmp.eq.s32.totalorder %s18, 0
      %p87 = por %p85, %p86
      %s88 = ssub.s32 %s12, %s19
      %p89 = scmp.eq.s32.totalorder %s88, 0
      %s91 = sadd.s32 %s90, 1
      %s92 = scalar_select %p89, %s90, %s91
      %p95 = pneg %p89
      %p96 = scmp.eq.s32.totalorder %s12, 1
      %p97 = por %p95, %p96
      %p98 = scmp.ne.s32.totalorder %s90, %s93
      %p99 = scmp.eq.s32.totalorder %s12, 0
      %p100 = por %p98, %p99
      %p101 = scmp.ne.s32.totalorder %s90, %s93
      %p102 = scmp.eq.s32.totalorder %s17, 1
      %p103 = por %p101, %p102
      %p104 = scmp.ne.s32.totalorder %s93, %s94
      %p105 = scmp.eq.s32.totalorder %s17, 0
      %p106 = por %p104, %p105
      %p107 = scmp.ne.s32.totalorder %s93, %s94
      %p108 = scmp.eq.s32.totalorder %s18, 1
      %p109 = por %p107, %p108
      %p111 = scmp.ne.s32.totalorder %s94, %s110
      %p112 = scmp.eq.s32.totalorder %s18, 0
      %p113 = por %p111, %p112
      %p114 = scmp.le.s32.totalorder 1, %s12
      %p115 = scmp.lt.s32.totalorder %s12, 3
      %p116 = pnand %p114, %p115
      %p117 = pneg %p116
      // Predicated region
      $region9: #{conv_encoder_forward.1} parent=5 // pred_check
        _
      $region10: #{conv_encoder_forward.1} parent=5 // pred_check_branch
        %119 = sbr.rel (%p116) target = $region12
      $region11: #{conv_encoder_forward.1} parent=5 // pred_region
        %s120 = ssub.s32 %s12, 1
        // Predicated region
        $region13: #{conv_encoder_forward.1} parent=11 // pred_check
          %p121 = pneg %p59
        $region14: #{conv_encoder_forward.1} parent=11 // pred_check_branch
          %123 = sbr.rel (%p121) target = $region16
        $region15: #{conv_encoder_forward.1} parent=11 // pred_region
          _
        $region16: #{conv_encoder_forward.1} parent=11 // pred_fallthru
          _
        // Predicated region
        $region17: #{conv_encoder_forward.1} parent=11 // pred_check
          %p124 = pneg %p80
        $region18: #{conv_encoder_forward.1} parent=11 // pred_check_branch
          %126 = sbr.rel (%p124) target = $region20
        $region19: #{conv_encoder_forward.1} parent=11 // pred_region
          _
        $region20: #{conv_encoder_forward.1} parent=11 // pred_fallthru
          _
      $region12: #{conv_encoder_forward.1} parent=5 // pred_fallthru
        _
      %p127 = scmp.lt.s32.totalorder %s12, 2
      // Predicated region
      $region21: #{conv_encoder_forward.1} parent=5 // pred_check
        %p128 = pneg %p127
      $region22: #{conv_encoder_forward.1} parent=5 // pred_check_branch
        %130 = sbr.rel (%p128) target = $region24
      $region23: #{conv_encoder_forward.1} parent=5 // pred_region
        // Predicated region
        $region25: #{conv_encoder_forward.1} parent=23 // pred_check
          %p131 = pneg %p32
        $region26: #{conv_encoder_forward.1} parent=23 // pred_check_branch
          %133 = sbr.rel (%p131) target = $region28
        $region27: #{conv_encoder_forward.1} parent=23 // pred_region
          %p134 = scmp.lt.s32.totalorder %s12, 1
          %s135 = scalar_select %p134, %s12, 1
          %s136 = smul.addr %s135, 4
          %s137 = scalar_lea.vmem %s0, %s136
        $region28: #{conv_encoder_forward.1} parent=23 // pred_fallthru
          _
      $region24: #{conv_encoder_forward.1} parent=5 // pred_fallthru
        _
      %p138 = scmp.le.s32.totalorder 1, %s12
      %p139 = scmp.lt.s32.totalorder %s12, 3
      %p140 = pnand %p138, %p139
      %p141 = pneg %p140
      // Predicated region
      $region29: #{conv_encoder_forward.1} parent=5 // pred_check
        _
      $region30: #{conv_encoder_forward.1} parent=5 // pred_check_branch
        %143 = sbr.rel (%p140) target = $region32
      $region31: #{conv_encoder_forward.1} parent=5 // pred_region
        %s144 = ssub.s32 %s12, 1
        %p145 = scmp.lt.s32.totalorder %s17, 1
        %s146 = scalar_select %p145, %s17, 1
        %s147 = smul.addr %s146, 4
        %s148 = scalar_lea.vmem %s0, %s147
        %p149 = pneg %p38
        %p150 = pneg %p35
        %p151 = pneg %p59
        %p152 = pneg %p56
        %p153 = pneg %p80
        %p154 = pneg %p77
        %p155 = pneg %p106
        %p156 = pneg %p103
        %s157 = sand.u32 %s93, 1
        %s158 = scalar_lea.sflag [#allocation3], %s157
        %s159 = sand.u32 %s93, 1
        %s160 = smul.addr %s159, 8
        %s161 = scalar_lea.vmem [#allocation2], %s160
        %p162 = scmp.lt.s32.totalorder %s17, 1
        %s163 = scalar_select %p162, %s17, 1
        %s164 = smul.addr %s163, 4
        %s165 = scalar_lea.vmem %s0, %s164
        %v166 = vld [vmem:[%s165] sm:$0xf]
        %v167 = vld [vmem:[%s2] sm:$0xff]
        %v168 = vld [vmem:[%s1] sm:$0xff]
        %s169 = scalar_lea.vmem %s1, 8
        %v170 = vld [vmem:[%s169] sm:$0xff]
        %172 = vrot.lane.b32.xlu0 %v166, 127
        %v173 = vpop.permute.xlu0 %172
        %vm174 = vcmask 31744
        %v176 = vsel %vm174, %v170, 0
        %vm178 = vcmask 1043456
        %v179 = vsel %vm178, %v173, 0
        %181 = vmatprep.subr.mxu0 0.0
        %v182 = vand.u32 %v179, 4294901760
        %183 = vmatpush1.msra.mxu0 %v182
        %184 = vmatprep.subr.mxu0 0.0
        %185 = vmatpush1.msra.mxu0 0.0
        %186 = vmatprep.subr.mxu0 0.0
        %187 = vmatpush1.msra.mxu0 0.0
        %188 = vmatprep.subr.mxu0 0.0
        %189 = vmatpush1.msra.mxu0 0.0
        %190 = vmatprep.subr.mxu0 0.0
        %191 = vmatpush1.msra.mxu0 0.0
        %192 = vmatprep.subr.mxu0 0.0
        %193 = vmatpush1.msra.mxu0 0.0
        %194 = vmatprep.subr.mxu0 0.0
        %195 = vmatpush1.msra.mxu0 0.0
        %196 = vmatprep.subr.mxu0 0.0
        %197 = vmatpush1.msra.mxu0 0.0
        %198 = vmatprep.subr.mxu0 0.0
        %199 = vmatpush1.msra.mxu0 0.0
        %200 = vmatprep.subr.mxu0 0.0
        %201 = vmatpush1.msra.mxu0 0.0
        %202 = vmatprep.subr.mxu0 0.0
        %203 = vmatpush1.msra.mxu0 0.0
        %204 = vmatprep.subr.mxu0 0.0
        %205 = vmatpush1.msra.mxu0 0.0
        %206 = vmatprep.subr.mxu0 0.0
        %207 = vmatpush1.msra.mxu0 0.0
        %208 = vmatprep.subr.mxu0 0.0
        %209 = vmatpush1.msra.mxu0 0.0
        %210 = vmatprep.subr.mxu0 0.0
        %211 = vmatpush1.msra.mxu0 0.0
        %212 = vmatprep.subr.mxu0 0.0
        %213 = vmatpush1.msra.mxu0 0.0
        %214 = vmatprep.subr.mxu0 0.0
        %215 = vmatpush1.msra.mxu0 0.0
        %216 = vmatprep.subr.mxu0 0.0
        %217 = vmatpush1.msra.mxu0 0.0
        %218 = vmatprep.subr.mxu0 0.0
        %219 = vmatpush1.msra.mxu0 0.0
        %220 = vmatprep.subr.mxu0 0.0
        %221 = vmatpush1.msra.mxu0 0.0
        %222 = vmatprep.subr.mxu0 0.0
        %223 = vmatpush1.msra.mxu0 0.0
        %224 = vmatprep.subr.mxu0 0.0
        %225 = vmatpush1.msra.mxu0 0.0
        %226 = vmatprep.subr.mxu0 0.0
        %227 = vmatpush1.msra.mxu0 0.0
        %228 = vmatprep.subr.mxu0 0.0
        %229 = vmatpush1.msra.mxu0 0.0
        %230 = vmatprep.subr.mxu0 0.0
        %231 = vmatpush1.msra.mxu0 0.0
        %232 = vmatprep.subr.mxu0 0.0
        %233 = vmatpush1.msra.mxu0 0.0
        %234 = vmatprep.subr.mxu0 0.0
        %235 = vmatpush1.msra.mxu0 0.0
        %236 = vmatprep.subr.mxu0 0.0
        %237 = vmatpush1.msra.mxu0 0.0
        %238 = vmatprep.subr.mxu0 0.0
        %239 = vmatpush1.msra.mxu0 0.0
        %240 = vmatprep.subr.mxu0 0.0
        %241 = vmatpush1.msra.mxu0 0.0
        %242 = vmatprep.subr.mxu0 0.0
        %243 = vmatpush1.msra.mxu0 0.0
        %244 = vmatprep.subr.mxu0 0.0
        %245 = vmatpush1.msra.mxu0 0.0
        %246 = vmatprep.mubr.f32.mxu0 0.0
        %v247 = vand.u32 %v176, 4294901760
        %v248 = vsub.f32 %v176, %v247
        %v249 = vand.u32 %v248, 4294901760
        %v250 = vsub.f32 %v248, %v249
        %v251 = vand.u32 %v250, 4294901760
        %252 = vmatmul.mubr.f32.gmra.mrb[0].mxu0 %v251
        %v253 = vpop.f32.mrb[0].mxu0
        %v254 = vadd.f32 0.0, %v253
        %v255 = vpop.f32.mrb[0].mxu0
        %256 = vdwg.mxu0
        %257 = vmatprep.subr.mxu0 0.0
        %v258 = vand.u32 %v179, 4294901760
        %v259 = vsub.f32 %v179, %v258
        %v260 = vand.u32 %v259, 4294901760
        %v261 = vsub.f32 %v259, %v260
        %v262 = vand.u32 %v261, 4294901760
        %263 = vmatpush1.msra.mxu0 %v262
        %264 = vmatprep.subr.mxu0 0.0
        %265 = vmatpush1.msra.mxu0 0.0
        %266 = vmatprep.subr.mxu0 0.0
        %267 = vmatpush1.msra.mxu0 0.0
        %268 = vmatprep.subr.mxu0 0.0
        %269 = vmatpush1.msra.mxu0 0.0
        %270 = vmatprep.subr.mxu0 0.0
        %271 = vmatpush1.msra.mxu0 0.0
        %272 = vmatprep.subr.mxu0 0.0
        %273 = vmatpush1.msra.mxu0 0.0
        %274 = vmatprep.subr.mxu0 0.0
        %275 = vmatpush1.msra.mxu0 0.0
        %276 = vmatprep.subr.mxu0 0.0
        %277 = vmatpush1.msra.mxu0 0.0
        %278 = vmatprep.subr.mxu0 0.0
        %279 = vmatpush1.msra.mxu0 0.0
        %280 = vmatprep.subr.mxu0 0.0
        %281 = vmatpush1.msra.mxu0 0.0
        %282 = vmatprep.subr.mxu0 0.0
        %283 = vmatpush1.msra.mxu0 0.0
        %284 = vmatprep.subr.mxu0 0.0
        %285 = vmatpush1.msra.mxu0 0.0
        %286 = vmatprep.subr.mxu0 0.0
        %287 = vmatpush1.msra.mxu0 0.0
        %288 = vmatprep.subr.mxu0 0.0
        %289 = vmatpush1.msra.mxu0 0.0
        %290 = vmatprep.subr.mxu0 0.0
        %291 = vmatpush1.msra.mxu0 0.0
        %292 = vmatprep.subr.mxu0 0.0
        %293 = vmatpush1.msra.mxu0 0.0
        %294 = vmatprep.subr.mxu0 0.0
        %295 = vmatpush1.msra.mxu0 0.0
        %296 = vmatprep.subr.mxu0 0.0
        %297 = vmatpush1.msra.mxu0 0.0
        %298 = vmatprep.subr.mxu0 0.0
        %299 = vmatpush1.msra.mxu0 0.0
        %300 = vmatprep.subr.mxu0 0.0
        %301 = vmatpush1.msra.mxu0 0.0
        %302 = vmatprep.subr.mxu0 0.0
        %303 = vmatpush1.msra.mxu0 0.0
        %304 = vmatprep.subr.mxu0 0.0
        %305 = vmatpush1.msra.mxu0 0.0
        %306 = vmatprep.subr.mxu0 0.0
        %307 = vmatpush1.msra.mxu0 0.0
        %308 = vmatprep.subr.mxu0 0.0
        %309 = vmatpush1.msra.mxu0 0.0
        %310 = vmatprep.subr.mxu0 0.0
        %311 = vmatpush1.msra.mxu0 0.0
        %312 = vmatprep.subr.mxu0 0.0
        %313 = vmatpush1.msra.mxu0 0.0
        %314 = vmatprep.subr.mxu0 0.0
        %315 = vmatpush1.msra.mxu0 0.0
        %316 = vmatprep.subr.mxu0 0.0
        %317 = vmatpush1.msra.mxu0 0.0
        %318 = vmatprep.subr.mxu0 0.0
        %319 = vmatpush1.msra.mxu0 0.0
        %320 = vmatprep.subr.mxu0 0.0
        %321 = vmatpush1.msra.mxu0 0.0
        %322 = vmatprep.subr.mxu0 0.0
        %323 = vmatpush1.msra.mxu0 0.0
        %324 = vmatprep.subr.mxu0 0.0
        %325 = vmatpush1.msra.mxu0 0.0
        %326 = vmatprep.mubr.f32.mxu0 0.0
        %v327 = vand.u32 %v176, 4294901760
        %328 = vmatmul.mubr.f32.gmra.mrb[0].mxu0 %v327
        %v329 = vpop.f32.mrb[0].mxu0
        %v330 = vadd.f32 %v254, %v329
        %v331 = vpop.f32.mrb[0].mxu0
        %332 = vdwg.mxu0
        %333 = vmatprep.subr.mxu0 0.0
        %v334 = vand.u32 %v179, 4294901760
        %v335 = vsub.f32 %v179, %v334
        %336 = vmatpush1.msra.mxu0 %v335
        %337 = vmatprep.subr.mxu0 0.0
        %338 = vmatpush1.msra.mxu0 0.0
        %339 = vmatprep.subr.mxu0 0.0
        %340 = vmatpush1.msra.mxu0 0.0
        %341 = vmatprep.subr.mxu0 0.0
        %342 = vmatpush1.msra.mxu0 0.0
        %343 = vmatprep.subr.mxu0 0.0
        %344 = vmatpush1.msra.mxu0 0.0
        %345 = vmatprep.subr.mxu0 0.0
        %346 = vmatpush1.msra.mxu0 0.0
        %347 = vmatprep.subr.mxu0 0.0
        %348 = vmatpush1.msra.mxu0 0.0
        %349 = vmatprep.subr.mxu0 0.0
        %350 = vmatpush1.msra.mxu0 0.0
        %351 = vmatprep.subr.mxu0 0.0
        %352 = vmatpush1.msra.mxu0 0.0
        %353 = vmatprep.subr.mxu0 0.0
        %354 = vmatpush1.msra.mxu0 0.0
        %355 = vmatprep.subr.mxu0 0.0
        %356 = vmatpush1.msra.mxu0 0.0
        %357 = vmatprep.subr.mxu0 0.0
        %358 = vmatpush1.msra.mxu0 0.0
        %359 = vmatprep.subr.mxu0 0.0
        %360 = vmatpush1.msra.mxu0 0.0
        %361 = vmatprep.subr.mxu0 0.0
        %362 = vmatpush1.msra.mxu0 0.0
        %363 = vmatprep.subr.mxu0 0.0
        %364 = vmatpush1.msra.mxu0 0.0
        %365 = vmatprep.subr.mxu0 0.0
        %366 = vmatpush1.msra.mxu0 0.0
        %367 = vmatprep.subr.mxu0 0.0
        %368 = vmatpush1.msra.mxu0 0.0
        %369 = vmatprep.subr.mxu0 0.0
        %370 = vmatpush1.msra.mxu0 0.0
        %371 = vmatprep.subr.mxu0 0.0
        %372 = vmatpush1.msra.mxu0 0.0
        %373 = vmatprep.subr.mxu0 0.0
        %374 = vmatpush1.msra.mxu0 0.0
        %375 = vmatprep.subr.mxu0 0.0
        %376 = vmatpush1.msra.mxu0 0.0
        %377 = vmatprep.subr.mxu0 0.0
        %378 = vmatpush1.msra.mxu0 0.0
        %379 = vmatprep.subr.mxu0 0.0
        %380 = vmatpush1.msra.mxu0 0.0
        %381 = vmatprep.subr.mxu0 0.0
        %382 = vmatpush1.msra.mxu0 0.0
        %383 = vmatprep.subr.mxu0 0.0
        %384 = vmatpush1.msra.mxu0 0.0
        %385 = vmatprep.subr.mxu0 0.0
        %386 = vmatpush1.msra.mxu0 0.0
        %387 = vmatprep.subr.mxu0 0.0
        %388 = vmatpush1.msra.mxu0 0.0
        %389 = vmatprep.subr.mxu0 0.0
        %390 = vmatpush1.msra.mxu0 0.0
        %391 = vmatprep.subr.mxu0 0.0
        %392 = vmatpush1.msra.mxu0 0.0
        %393 = vmatprep.subr.mxu0 0.0
        %394 = vmatpush1.msra.mxu0 0.0
        %395 = vmatprep.subr.mxu0 0.0
        %396 = vmatpush1.msra.mxu0 0.0
        %397 = vmatprep.subr.mxu0 0.0
        %398 = vmatpush1.msra.mxu0 0.0
        %399 = vmatprep.mubr.f32.mxu0 0.0
        %v400 = vand.u32 %v176, 4294901760
        %v401 = vsub.f32 %v176, %v400
        %402 = vmatmul.mubr.f32.gmra.mrb[0].mxu0 %v401
        %v403 = vpop.f32.mrb[0].mxu0
        %v404 = vadd.f32 %v330, %v403
        %v405 = vpop.f32.mrb[0].mxu0
        %406 = vdwg.mxu0
        %407 = vmatprep.subr.mxu0 0.0
        %v408 = vand.u32 %v179, 4294901760
        %409 = vmatpush1.msra.mxu0 %v408
        %410 = vmatprep.subr.mxu0 0.0
        %411 = vmatpush1.msra.mxu0 0.0
        %412 = vmatprep.subr.mxu0 0.0
        %413 = vmatpush1.msra.mxu0 0.0
        %414 = vmatprep.subr.mxu0 0.0
        %415 = vmatpush1.msra.mxu0 0.0
        %416 = vmatprep.subr.mxu0 0.0
        %417 = vmatpush1.msra.mxu0 0.0
        %418 = vmatprep.subr.mxu0 0.0
        %419 = vmatpush1.msra.mxu0 0.0
        %420 = vmatprep.subr.mxu0 0.0
        %421 = vmatpush1.msra.mxu0 0.0
        %422 = vmatprep.subr.mxu0 0.0
        %423 = vmatpush1.msra.mxu0 0.0
        %424 = vmatprep.subr.mxu0 0.0
        %425 = vmatpush1.msra.mxu0 0.0
        %426 = vmatprep.subr.mxu0 0.0
        %427 = vmatpush1.msra.mxu0 0.0
        %428 = vmatprep.subr.mxu0 0.0
        %429 = vmatpush1.msra.mxu0 0.0
        %430 = vmatprep.subr.mxu0 0.0
        %431 = vmatpush1.msra.mxu0 0.0
        %432 = vmatprep.subr.mxu0 0.0
        %433 = vmatpush1.msra.mxu0 0.0
        %434 = vmatprep.subr.mxu0 0.0
        %435 = vmatpush1.msra.mxu0 0.0
        %436 = vmatprep.subr.mxu0 0.0
        %437 = vmatpush1.msra.mxu0 0.0
        %438 = vmatprep.subr.mxu0 0.0
        %439 = vmatpush1.msra.mxu0 0.0
        %440 = vmatprep.subr.mxu0 0.0
        %441 = vmatpush1.msra.mxu0 0.0
        %442 = vmatprep.subr.mxu0 0.0
        %443 = vmatpush1.msra.mxu0 0.0
        %444 = vmatprep.subr.mxu0 0.0
        %445 = vmatpush1.msra.mxu0 0.0
        %446 = vmatprep.subr.mxu0 0.0
        %447 = vmatpush1.msra.mxu0 0.0
        %448 = vmatprep.subr.mxu0 0.0
        %449 = vmatpush1.msra.mxu0 0.0
        %450 = vmatprep.subr.mxu0 0.0
        %451 = vmatpush1.msra.mxu0 0.0
        %452 = vmatprep.subr.mxu0 0.0
        %453 = vmatpush1.msra.mxu0 0.0
        %454 = vmatprep.subr.mxu0 0.0
        %455 = vmatpush1.msra.mxu0 0.0
        %456 = vmatprep.subr.mxu0 0.0
        %457 = vmatpush1.msra.mxu0 0.0
        %458 = vmatprep.subr.mxu0 0.0
        %459 = vmatpush1.msra.mxu0 0.0
        %460 = vmatprep.subr.mxu0 0.0
        %461 = vmatpush1.msra.mxu0 0.0
        %462 = vmatprep.subr.mxu0 0.0
        %463 = vmatpush1.msra.mxu0 0.0
        %464 = vmatprep.subr.mxu0 0.0
        %465 = vmatpush1.msra.mxu0 0.0
        %466 = vmatprep.subr.mxu0 0.0
        %467 = vmatpush1.msra.mxu0 0.0
        %468 = vmatprep.subr.mxu0 0.0
        %469 = vmatpush1.msra.mxu0 0.0
        %470 = vmatprep.subr.mxu0 0.0
        %471 = vmatpush1.msra.mxu0 0.0
        %472 = vmatprep.mubr.f32.mxu0 0.0
        %v473 = vand.u32 %v176, 4294901760
        %v474 = vsub.f32 %v176, %v473
        %v475 = vand.u32 %v474, 4294901760
        %476 = vmatmul.mubr.f32.gmra.mrb[0].mxu0 %v475
        %v477 = vpop.f32.mrb[0].mxu0
        %v478 = vadd.f32 %v404, %v477
        %v479 = vpop.f32.mrb[0].mxu0
        %480 = vdwg.mxu0
        %481 = vmatprep.subr.mxu0 0.0
        %v482 = vand.u32 %v179, 4294901760
        %v483 = vsub.f32 %v179, %v482
        %v484 = vand.u32 %v483, 4294901760
        %485 = vmatpush1.msra.mxu0 %v484
        %486 = vmatprep.subr.mxu0 0.0
        %487 = vmatpush1.msra.mxu0 0.0
        %488 = vmatprep.subr.mxu0 0.0
        %489 = vmatpush1.msra.mxu0 0.0
        %490 = vmatprep.subr.mxu0 0.0
        %491 = vmatpush1.msra.mxu0 0.0
        %492 = vmatprep.subr.mxu0 0.0
        %493 = vmatpush1.msra.mxu0 0.0
        %494 = vmatprep.subr.mxu0 0.0
        %495 = vmatpush1.msra.mxu0 0.0
        %496 = vmatprep.subr.mxu0 0.0
        %497 = vmatpush1.msra.mxu0 0.0
        %498 = vmatprep.subr.mxu0 0.0
        %499 = vmatpush1.msra.mxu0 0.0
        %500 = vmatprep.subr.mxu0 0.0
        %501 = vmatpush1.msra.mxu0 0.0
        %502 = vmatprep.subr.mxu0 0.0
        %503 = vmatpush1.msra.mxu0 0.0
        %504 = vmatprep.subr.mxu0 0.0
        %505 = vmatpush1.msra.mxu0 0.0
        %506 = vmatprep.subr.mxu0 0.0
        %507 = vmatpush1.msra.mxu0 0.0
        %508 = vmatprep.subr.mxu0 0.0
        %509 = vmatpush1.msra.mxu0 0.0
        %510 = vmatprep.subr.mxu0 0.0
        %511 = vmatpush1.msra.mxu0 0.0
        %512 = vmatprep.subr.mxu0 0.0
        %513 = vmatpush1.msra.mxu0 0.0
        %514 = vmatprep.subr.mxu0 0.0
        %515 = vmatpush1.msra.mxu0 0.0
        %516 = vmatprep.subr.mxu0 0.0
        %517 = vmatpush1.msra.mxu0 0.0
        %518 = vmatprep.subr.mxu0 0.0
        %519 = vmatpush1.msra.mxu0 0.0
        %520 = vmatprep.subr.mxu0 0.0
        %521 = vmatpush1.msra.mxu0 0.0
        %522 = vmatprep.subr.mxu0 0.0
        %523 = vmatpush1.msra.mxu0 0.0
        %524 = vmatprep.subr.mxu0 0.0
        %525 = vmatpush1.msra.mxu0 0.0
        %526 = vmatprep.subr.mxu0 0.0
        %527 = vmatpush1.msra.mxu0 0.0
        %528 = vmatprep.subr.mxu0 0.0
        %529 = vmatpush1.msra.mxu0 0.0
        %530 = vmatprep.subr.mxu0 0.0
        %531 = vmatpush1.msra.mxu0 0.0
        %532 = vmatprep.subr.mxu0 0.0
        %533 = vmatpush1.msra.mxu0 0.0
        %534 = vmatprep.subr.mxu0 0.0
        %535 = vmatpush1.msra.mxu0 0.0
        %536 = vmatprep.subr.mxu0 0.0
        %537 = vmatpush1.msra.mxu0 0.0
        %538 = vmatprep.subr.mxu0 0.0
        %539 = vmatpush1.msra.mxu0 0.0
        %540 = vmatprep.subr.mxu0 0.0
        %541 = vmatpush1.msra.mxu0 0.0
        %542 = vmatprep.subr.mxu0 0.0
        %543 = vmatpush1.msra.mxu0 0.0
        %544 = vmatprep.subr.mxu0 0.0
        %545 = vmatpush1.msra.mxu0 0.0
        %546 = vmatprep.subr.mxu0 0.0
        %547 = vmatpush1.msra.mxu0 0.0
        %548 = vmatprep.mubr.f32.mxu0 0.0
        %v549 = vand.u32 %v176, 4294901760
        %550 = vmatmul.mubr.f32.gmra.mrb[0].mxu0 %v549
        %v551 = vpop.f32.mrb[0].mxu0
        %v552 = vadd.f32 %v478, %v551
        %v553 = vpop.f32.mrb[0].mxu0
        %554 = vdwg.mxu0
        %555 = vmatprep.subr.mxu0 0.0
        %v556 = vand.u32 %v179, 4294901760
        %557 = vmatpush1.msra.mxu0 %v556
        %558 = vmatprep.subr.mxu0 0.0
        %559 = vmatpush1.msra.mxu0 0.0
        %560 = vmatprep.subr.mxu0 0.0
        %561 = vmatpush1.msra.mxu0 0.0
        %562 = vmatprep.subr.mxu0 0.0
        %563 = vmatpush1.msra.mxu0 0.0
        %564 = vmatprep.subr.mxu0 0.0
        %565 = vmatpush1.msra.mxu0 0.0
        %566 = vmatprep.subr.mxu0 0.0
        %567 = vmatpush1.msra.mxu0 0.0
        %568 = vmatprep.subr.mxu0 0.0
        %569 = vmatpush1.msra.mxu0 0.0
        %570 = vmatprep.subr.mxu0 0.0
        %571 = vmatpush1.msra.mxu0 0.0
        %572 = vmatprep.subr.mxu0 0.0
        %573 = vmatpush1.msra.mxu0 0.0
        %574 = vmatprep.subr.mxu0 0.0
        %575 = vmatpush1.msra.mxu0 0.0
        %576 = vmatprep.subr.mxu0 0.0
        %577 = vmatpush1.msra.mxu0 0.0
        %578 = vmatprep.subr.mxu0 0.0
        %579 = vmatpush1.msra.mxu0 0.0
        %580 = vmatprep.subr.mxu0 0.0
        %581 = vmatpush1.msra.mxu0 0.0
        %582 = vmatprep.subr.mxu0 0.0
        %583 = vmatpush1.msra.mxu0 0.0
        %584 = vmatprep.subr.mxu0 0.0
        %585 = vmatpush1.msra.mxu0 0.0
        %586 = vmatprep.subr.mxu0 0.0
        %587 = vmatpush1.msra.mxu0 0.0
        %588 = vmatprep.subr.mxu0 0.0
        %589 = vmatpush1.msra.mxu0 0.0
        %590 = vmatprep.subr.mxu0 0.0
        %591 = vmatpush1.msra.mxu0 0.0
        %592 = vmatprep.subr.mxu0 0.0
        %593 = vmatpush1.msra.mxu0 0.0
        %594 = vmatprep.subr.mxu0 0.0
        %595 = vmatpush1.msra.mxu0 0.0
        %596 = vmatprep.subr.mxu0 0.0
        %597 = vmatpush1.msra.mxu0 0.0
        %598 = vmatprep.subr.mxu0 0.0
        %599 = vmatpush1.msra.mxu0 0.0
        %600 = vmatprep.subr.mxu0 0.0
        %601 = vmatpush1.msra.mxu0 0.0
        %602 = vmatprep.subr.mxu0 0.0
        %603 = vmatpush1.msra.mxu0 0.0
        %604 = vmatprep.subr.mxu0 0.0
        %605 = vmatpush1.msra.mxu0 0.0
        %606 = vmatprep.subr.mxu0 0.0
        %607 = vmatpush1.msra.mxu0 0.0
        %608 = vmatprep.subr.mxu0 0.0
        %609 = vmatpush1.msra.mxu0 0.0
        %610 = vmatprep.subr.mxu0 0.0
        %611 = vmatpush1.msra.mxu0 0.0
        %612 = vmatprep.subr.mxu0 0.0
        %613 = vmatpush1.msra.mxu0 0.0
        %614 = vmatprep.subr.mxu0 0.0
        %615 = vmatpush1.msra.mxu0 0.0
        %616 = vmatprep.subr.mxu0 0.0
        %617 = vmatpush1.msra.mxu0 0.0
        %618 = vmatprep.subr.mxu0 0.0
        %619 = vmatpush1.msra.mxu0 0.0
        %620 = vmatprep.mubr.f32.mxu0 0.0
        %v621 = vand.u32 %v176, 4294901760
        %622 = vmatmul.mubr.f32.gmra.mrb[0].mxu0 %v621
        %v623 = vpop.f32.mrb[0].mxu0
        %v624 = vadd.f32 %v552, %v623
        %v625 = vpop.f32.mrb[0].mxu0
        %626 = vdwg.mxu0
        %v628 = vsel %vm174, %v168, 0
        %v630 = vsel %vm178, %v166, 0
        %632 = vmatprep.subr.mxu0 0.0
        %v633 = vand.u32 %v630, 4294901760
        %634 = vmatpush1.msra.mxu0 %v633
        %635 = vmatprep.subr.mxu0 0.0
        %636 = vmatpush1.msra.mxu0 0.0
        %637 = vmatprep.subr.mxu0 0.0
        %638 = vmatpush1.msra.mxu0 0.0
        %639 = vmatprep.subr.mxu0 0.0
        %640 = vmatpush1.msra.mxu0 0.0
        %641 = vmatprep.subr.mxu0 0.0
        %642 = vmatpush1.msra.mxu0 0.0
        %643 = vmatprep.subr.mxu0 0.0
        %644 = vmatpush1.msra.mxu0 0.0
        %645 = vmatprep.subr.mxu0 0.0
        %646 = vmatpush1.msra.mxu0 0.0
        %647 = vmatprep.subr.mxu0 0.0
        %648 = vmatpush1.msra.mxu0 0.0
        %649 = vmatprep.subr.mxu0 0.0
        %650 = vmatpush1.msra.mxu0 0.0
        %651 = vmatprep.subr.mxu0 0.0
        %652 = vmatpush1.msra.mxu0 0.0
        %653 = vmatprep.subr.mxu0 0.0
        %654 = vmatpush1.msra.mxu0 0.0
        %655 = vmatprep.subr.mxu0 0.0
        %656 = vmatpush1.msra.mxu0 0.0
        %657 = vmatprep.subr.mxu0 0.0
        %658 = vmatpush1.msra.mxu0 0.0
        %659 = vmatprep.subr.mxu0 0.0
        %660 = vmatpush1.msra.mxu0 0.0
        %661 = vmatprep.subr.mxu0 0.0
        %662 = vmatpush1.msra.mxu0 0.0
        %663 = vmatprep.subr.mxu0 0.0
        %664 = vmatpush1.msra.mxu0 0.0
        %665 = vmatprep.subr.mxu0 0.0
        %666 = vmatpush1.msra.mxu0 0.0
        %667 = vmatprep.subr.mxu0 0.0
        %668 = vmatpush1.msra.mxu0 0.0
        %669 = vmatprep.subr.mxu0 0.0
        %670 = vmatpush1.msra.mxu0 0.0
        %671 = vmatprep.subr.mxu0 0.0
        %672 = vmatpush1.msra.mxu0 0.0
        %673 = vmatprep.subr.mxu0 0.0
        %674 = vmatpush1.msra.mxu0 0.0
        %675 = vmatprep.subr.mxu0 0.0
        %676 = vmatpush1.msra.mxu0 0.0
        %677 = vmatprep.subr.mxu0 0.0
        %678 = vmatpush1.msra.mxu0 0.0
        %679 = vmatprep.subr.mxu0 0.0
        %680 = vmatpush1.msra.mxu0 0.0
        %681 = vmatprep.subr.mxu0 0.0
        %682 = vmatpush1.msra.mxu0 0.0
        %683 = vmatprep.subr.mxu0 0.0
        %684 = vmatpush1.msra.mxu0 0.0
        %685 = vmatprep.subr.mxu0 0.0
        %686 = vmatpush1.msra.mxu0 0.0
        %687 = vmatprep.subr.mxu0 0.0
        %688 = vmatpush1.msra.mxu0 0.0
        %689 = vmatprep.subr.mxu0 0.0
        %690 = vmatpush1.msra.mxu0 0.0
        %691 = vmatprep.subr.mxu0 0.0
        %692 = vmatpush1.msra.mxu0 0.0
        %693 = vmatprep.subr.mxu0 0.0
        %694 = vmatpush1.msra.mxu0 0.0
        %695 = vmatprep.subr.mxu0 0.0
        %696 = vmatpush1.msra.mxu0 0.0
        %697 = vmatprep.mubr.f32.mxu0 0.0
        %v698 = vand.u32 %v628, 4294901760
        %v699 = vsub.f32 %v628, %v698
        %v700 = vand.u32 %v699, 4294901760
        %v701 = vsub.f32 %v699, %v700
        %v702 = vand.u32 %v701, 4294901760
        %703 = vmatmul.mubr.f32.gmra.mrb[0].mxu0 %v702
        %v704 = vpop.f32.mrb[0].mxu0
        %v705 = vadd.f32 %v624, %v704
        %v706 = vpop.f32.mrb[0].mxu0
        %707 = vdwg.mxu0
        %708 = vmatprep.subr.mxu0 0.0
        %v709 = vand.u32 %v630, 4294901760
        %v710 = vsub.f32 %v630, %v709
        %v711 = vand.u32 %v710, 4294901760
        %v712 = vsub.f32 %v710, %v711
        %v713 = vand.u32 %v712, 4294901760
        %714 = vmatpush1.msra.mxu0 %v713
        %715 = vmatprep.subr.mxu0 0.0
        %716 = vmatpush1.msra.mxu0 0.0
        %717 = vmatprep.subr.mxu0 0.0
        %718 = vmatpush1.msra.mxu0 0.0
        %719 = vmatprep.subr.mxu0 0.0
        %720 = vmatpush1.msra.mxu0 0.0
        %721 = vmatprep.subr.mxu0 0.0
        %722 = vmatpush1.msra.mxu0 0.0
        %723 = vmatprep.subr.mxu0 0.0
        %724 = vmatpush1.msra.mxu0 0.0
        %725 = vmatprep.subr.mxu0 0.0
        %726 = vmatpush1.msra.mxu0 0.0
        %727 = vmatprep.subr.mxu0 0.0
        %728 = vmatpush1.msra.mxu0 0.0
        %729 = vmatprep.subr.mxu0 0.0
        %730 = vmatpush1.msra.mxu0 0.0
        %731 = vmatprep.subr.mxu0 0.0
        %732 = vmatpush1.msra.mxu0 0.0
        %733 = vmatprep.subr.mxu0 0.0
        %734 = vmatpush1.msra.mxu0 0.0
        %735 = vmatprep.subr.mxu0 0.0
        %736 = vmatpush1.msra.mxu0 0.0
        %737 = vmatprep.subr.mxu0 0.0
        %738 = vmatpush1.msra.mxu0 0.0
        %739 = vmatprep.subr.mxu0 0.0
        %740 = vmatpush1.msra.mxu0 0.0
        %741 = vmatprep.subr.mxu0 0.0
        %742 = vmatpush1.msra.mxu0 0.0
        %743 = vmatprep.subr.mxu0 0.0
        %744 = vmatpush1.msra.mxu0 0.0
        %745 = vmatprep.subr.mxu0 0.0
        %746 = vmatpush1.msra.mxu0 0.0
        %747 = vmatprep.subr.mxu0 0.0
        %748 = vmatpush1.msra.mxu0 0.0
        %749 = vmatprep.subr.mxu0 0.0
        %750 = vmatpush1.msra.mxu0 0.0
        %751 = vmatprep.subr.mxu0 0.0
        %752 = vmatpush1.msra.mxu0 0.0
        %753 = vmatprep.subr.mxu0 0.0
        %754 = vmatpush1.msra.mxu0 0.0
        %755 = vmatprep.subr.mxu0 0.0
        %756 = vmatpush1.msra.mxu0 0.0
        %757 = vmatprep.subr.mxu0 0.0
        %758 = vmatpush1.msra.mxu0 0.0
        %759 = vmatprep.subr.mxu0 0.0
        %760 = vmatpush1.msra.mxu0 0.0
        %761 = vmatprep.subr.mxu0 0.0
        %762 = vmatpush1.msra.mxu0 0.0
        %763 = vmatprep.subr.mxu0 0.0
        %764 = vmatpush1.msra.mxu0 0.0
        %765 = vmatprep.subr.mxu0 0.0
        %766 = vmatpush1.msra.mxu0 0.0
        %767 = vmatprep.subr.mxu0 0.0
        %768 = vmatpush1.msra.mxu0 0.0
        %769 = vmatprep.subr.mxu0 0.0
        %770 = vmatpush1.msra.mxu0 0.0
        %771 = vmatprep.subr.mxu0 0.0
        %772 = vmatpush1.msra.mxu0 0.0
        %773 = vmatprep.subr.mxu0 0.0
        %774 = vmatpush1.msra.mxu0 0.0
        %775 = vmatprep.subr.mxu0 0.0
        %776 = vmatpush1.msra.mxu0 0.0
        %777 = vmatprep.mubr.f32.mxu0 0.0
        %v778 = vand.u32 %v628, 4294901760
        %779 = vmatmul.mubr.f32.gmra.mrb[0].mxu0 %v778
        %v780 = vpop.f32.mrb[0].mxu0
        %v781 = vadd.f32 %v705, %v780
        %v782 = vpop.f32.mrb[0].mxu0
        %783 = vdwg.mxu0
        %784 = vmatprep.subr.mxu0 0.0
        %v785 = vand.u32 %v630, 4294901760
        %v786 = vsub.f32 %v630, %v785
        %787 = vmatpush1.msra.mxu0 %v786
        %788 = vmatprep.subr.mxu0 0.0
        %789 = vmatpush1.msra.mxu0 0.0
        %790 = vmatprep.subr.mxu0 0.0
        %791 = vmatpush1.msra.mxu0 0.0
        %792 = vmatprep.subr.mxu0 0.0
        %793 = vmatpush1.msra.mxu0 0.0
        %794 = vmatprep.subr.mxu0 0.0
        %795 = vmatpush1.msra.mxu0 0.0
        %796 = vmatprep.subr.mxu0 0.0
        %797 = vmatpush1.msra.mxu0 0.0
        %798 = vmatprep.subr.mxu0 0.0
        %799 = vmatpush1.msra.mxu0 0.0
        %800 = vmatprep.subr.mxu0 0.0
        %801 = vmatpush1.msra.mxu0 0.0
        %802 = vmatprep.subr.mxu0 0.0
        %803 = vmatpush1.msra.mxu0 0.0
        %804 = vmatprep.subr.mxu0 0.0
        %805 = vmatpush1.msra.mxu0 0.0
        %806 = vmatprep.subr.mxu0 0.0
        %807 = vmatpush1.msra.mxu0 0.0
        %808 = vmatprep.subr.mxu0 0.0
        %809 = vmatpush1.msra.mxu0 0.0
        %810 = vmatprep.subr.mxu0 0.0
        %811 = vmatpush1.msra.mxu0 0.0
        %812 = vmatprep.subr.mxu0 0.0
        %813 = vmatpush1.msra.mxu0 0.0
        %814 = vmatprep.subr.mxu0 0.0
        %815 = vmatpush1.msra.mxu0 0.0
        %816 = vmatprep.subr.mxu0 0.0
        %817 = vmatpush1.msra.mxu0 0.0
        %818 = vmatprep.subr.mxu0 0.0
        %819 = vmatpush1.msra.mxu0 0.0
        %820 = vmatprep.subr.mxu0 0.0
        %821 = vmatpush1.msra.mxu0 0.0
        %822 = vmatprep.subr.mxu0 0.0
        %823 = vmatpush1.msra.mxu0 0.0
        %824 = vmatprep.subr.mxu0 0.0
        %825 = vmatpush1.msra.mxu0 0.0
        %826 = vmatprep.subr.mxu0 0.0
        %827 = vmatpush1.msra.mxu0 0.0
        %828 = vmatprep.subr.mxu0 0.0
        %829 = vmatpush1.msra.mxu0 0.0
        %830 = vmatprep.subr.mxu0 0.0
        %831 = vmatpush1.msra.mxu0 0.0
        %832 = vmatprep.subr.mxu0 0.0
        %833 = vmatpush1.msra.mxu0 0.0
        %834 = vmatprep.subr.mxu0 0.0
        %835 = vmatpush1.msra.mxu0 0.0
        %836 = vmatprep.subr.mxu0 0.0
        %837 = vmatpush1.msra.mxu0 0.0
        %838 = vmatprep.subr.mxu0 0.0
        %839 = vmatpush1.msra.mxu0 0.0
        %840 = vmatprep.subr.mxu0 0.0
        %841 = vmatpush1.msra.mxu0 0.0
        %842 = vmatprep.subr.mxu0 0.0
        %843 = vmatpush1.msra.mxu0 0.0
        %844 = vmatprep.subr.mxu0 0.0
        %845 = vmatpush1.msra.mxu0 0.0
        %846 = vmatprep.subr.mxu0 0.0
        %847 = vmatpush1.msra.mxu0 0.0
        %848 = vmatprep.subr.mxu0 0.0
        %849 = vmatpush1.msra.mxu0 0.0
        %850 = vmatprep.mubr.f32.mxu0 0.0
        %v851 = vand.u32 %v628, 4294901760
        %v852 = vsub.f32 %v628, %v851
        %853 = vmatmul.mubr.f32.gmra.mrb[0].mxu0 %v852
        %v854 = vpop.f32.mrb[0].mxu0
        %v855 = vadd.f32 %v781, %v854
        %v856 = vpop.f32.mrb[0].mxu0
        %857 = vdwg.mxu0
        %858 = vmatprep.subr.mxu0 0.0
        %v859 = vand.u32 %v630, 4294901760
        %860 = vmatpush1.msra.mxu0 %v859
        %861 = vmatprep.subr.mxu0 0.0
        %862 = vmatpush1.msra.mxu0 0.0
        %863 = vmatprep.subr.mxu0 0.0
        %864 = vmatpush1.msra.mxu0 0.0
        %865 = vmatprep.subr.mxu0 0.0
        %866 = vmatpush1.msra.mxu0 0.0
        %867 = vmatprep.subr.mxu0 0.0
        %868 = vmatpush1.msra.mxu0 0.0
        %869 = vmatprep.subr.mxu0 0.0
        %870 = vmatpush1.msra.mxu0 0.0
        %871 = vmatprep.subr.mxu0 0.0
        %872 = vmatpush1.msra.mxu0 0.0
        %873 = vmatprep.subr.mxu0 0.0
        %874 = vmatpush1.msra.mxu0 0.0
        %875 = vmatprep.subr.mxu0 0.0
        %876 = vmatpush1.msra.mxu0 0.0
        %877 = vmatprep.subr.mxu0 0.0
        %878 = vmatpush1.msra.mxu0 0.0
        %879 = vmatprep.subr.mxu0 0.0
        %880 = vmatpush1.msra.mxu0 0.0
        %881 = vmatprep.subr.mxu0 0.0
        %882 = vmatpush1.msra.mxu0 0.0
        %883 = vmatprep.subr.mxu0 0.0
        %884 = vmatpush1.msra.mxu0 0.0
        %885 = vmatprep.subr.mxu0 0.0
        %886 = vmatpush1.msra.mxu0 0.0
        %887 = vmatprep.subr.mxu0 0.0
        %888 = vmatpush1.msra.mxu0 0.0
        %889 = vmatprep.subr.mxu0 0.0
        %890 = vmatpush1.msra.mxu0 0.0
        %891 = vmatprep.subr.mxu0 0.0
        %892 = vmatpush1.msra.mxu0 0.0
        %893 = vmatprep.subr.mxu0 0.0
        %894 = vmatpush1.msra.mxu0 0.0
        %895 = vmatprep.subr.mxu0 0.0
        %896 = vmatpush1.msra.mxu0 0.0
        %897 = vmatprep.subr.mxu0 0.0
        %898 = vmatpush1.msra.mxu0 0.0
        %899 = vmatprep.subr.mxu0 0.0
        %900 = vmatpush1.msra.mxu0 0.0
        %901 = vmatprep.subr.mxu0 0.0
        %902 = vmatpush1.msra.mxu0 0.0
        %903 = vmatprep.subr.mxu0 0.0
        %904 = vmatpush1.msra.mxu0 0.0
        %905 = vmatprep.subr.mxu0 0.0
        %906 = vmatpush1.msra.mxu0 0.0
        %907 = vmatprep.subr.mxu0 0.0
        %908 = vmatpush1.msra.mxu0 0.0
        %909 = vmatprep.subr.mxu0 0.0
        %910 = vmatpush1.msra.mxu0 0.0
        %911 = vmatprep.subr.mxu0 0.0
        %912 = vmatpush1.msra.mxu0 0.0
        %913 = vmatprep.subr.mxu0 0.0
        %914 = vmatpush1.msra.mxu0 0.0
        %915 = vmatprep.subr.mxu0 0.0
        %916 = vmatpush1.msra.mxu0 0.0
        %917 = vmatprep.subr.mxu0 0.0
        %918 = vmatpush1.msra.mxu0 0.0
        %919 = vmatprep.subr.mxu0 0.0
        %920 = vmatpush1.msra.mxu0 0.0
        %921 = vmatprep.subr.mxu0 0.0
        %922 = vmatpush1.msra.mxu0 0.0
        %923 = vmatprep.mubr.f32.mxu0 0.0
        %v924 = vand.u32 %v628, 4294901760
        %v925 = vsub.f32 %v628, %v924
        %v926 = vand.u32 %v925, 4294901760
        %927 = vmatmul.mubr.f32.gmra.mrb[0].mxu0 %v926
        %v928 = vpop.f32.mrb[0].mxu0
        %v929 = vadd.f32 %v855, %v928
        %v930 = vpop.f32.mrb[0].mxu0
        %931 = vdwg.mxu0
        %932 = vmatprep.subr.mxu0 0.0
        %v933 = vand.u32 %v630, 4294901760
        %v934 = vsub.f32 %v630, %v933
        %v935 = vand.u32 %v934, 4294901760
        %936 = vmatpush1.msra.mxu0 %v935
        %937 = vmatprep.subr.mxu0 0.0
        %938 = vmatpush1.msra.mxu0 0.0
        %939 = vmatprep.subr.mxu0 0.0
        %940 = vmatpush1.msra.mxu0 0.0
        %941 = vmatprep.subr.mxu0 0.0
        %942 = vmatpush1.msra.mxu0 0.0
        %943 = vmatprep.subr.mxu0 0.0
        %944 = vmatpush1.msra.mxu0 0.0
        %945 = vmatprep.subr.mxu0 0.0
        %946 = vmatpush1.msra.mxu0 0.0
        %947 = vmatprep.subr.mxu0 0.0
        %948 = vmatpush1.msra.mxu0 0.0
        %949 = vmatprep.subr.mxu0 0.0
        %950 = vmatpush1.msra.mxu0 0.0
        %951 = vmatprep.subr.mxu0 0.0
        %952 = vmatpush1.msra.mxu0 0.0
        %953 = vmatprep.subr.mxu0 0.0
        %954 = vmatpush1.msra.mxu0 0.0
        %955 = vmatprep.subr.mxu0 0.0
        %956 = vmatpush1.msra.mxu0 0.0
        %957 = vmatprep.subr.mxu0 0.0
        %958 = vmatpush1.msra.mxu0 0.0
        %959 = vmatprep.subr.mxu0 0.0
        %960 = vmatpush1.msra.mxu0 0.0
        %961 = vmatprep.subr.mxu0 0.0
        %962 = vmatpush1.msra.mxu0 0.0
        %963 = vmatprep.subr.mxu0 0.0
        %964 = vmatpush1.msra.mxu0 0.0
        %965 = vmatprep.subr.mxu0 0.0
        %966 = vmatpush1.msra.mxu0 0.0
        %967 = vmatprep.subr.mxu0 0.0
        %968 = vmatpush1.msra.mxu0 0.0
        %969 = vmatprep.subr.mxu0 0.0
        %970 = vmatpush1.msra.mxu0 0.0
        %971 = vmatprep.subr.mxu0 0.0
        %972 = vmatpush1.msra.mxu0 0.0
        %973 = vmatprep.subr.mxu0 0.0
        %974 = vmatpush1.msra.mxu0 0.0
        %975 = vmatprep.subr.mxu0 0.0
        %976 = vmatpush1.msra.mxu0 0.0
        %977 = vmatprep.subr.mxu0 0.0
        %978 = vmatpush1.msra.mxu0 0.0
        %979 = vmatprep.subr.mxu0 0.0
        %980 = vmatpush1.msra.mxu0 0.0
        %981 = vmatprep.subr.mxu0 0.0
        %982 = vmatpush1.msra.mxu0 0.0
        %983 = vmatprep.subr.mxu0 0.0
        %984 = vmatpush1.msra.mxu0 0.0
        %985 = vmatprep.subr.mxu0 0.0
        %986 = vmatpush1.msra.mxu0 0.0
        %987 = vmatprep.subr.mxu0 0.0
        %988 = vmatpush1.msra.mxu0 0.0
        %989 = vmatprep.subr.mxu0 0.0
        %990 = vmatpush1.msra.mxu0 0.0
        %991 = vmatprep.subr.mxu0 0.0
        %992 = vmatpush1.msra.mxu0 0.0
        %993 = vmatprep.subr.mxu0 0.0
        %994 = vmatpush1.msra.mxu0 0.0
        %995 = vmatprep.subr.mxu0 0.0
        %996 = vmatpush1.msra.mxu0 0.0
        %997 = vmatprep.subr.mxu0 0.0
        %998 = vmatpush1.msra.mxu0 0.0
        %999 = vmatprep.mubr.f32.mxu0 0.0
        %v1000 = vand.u32 %v628, 4294901760
        %1001 = vmatmul.mubr.f32.gmra.mrb[0].mxu0 %v1000
        %v1002 = vpop.f32.mrb[0].mxu0
        %v1003 = vadd.f32 %v929, %v1002
        %v1004 = vpop.f32.mrb[0].mxu0
        %1005 = vdwg.mxu0
        %1006 = vmatprep.subr.mxu0 0.0
        %v1007 = vand.u32 %v630, 4294901760
        %1008 = vmatpush1.msra.mxu0 %v1007
        %1009 = vmatprep.subr.mxu0 0.0
        %1010 = vmatpush1.msra.mxu0 0.0
        %1011 = vmatprep.subr.mxu0 0.0
        %1012 = vmatpush1.msra.mxu0 0.0
        %1013 = vmatprep.subr.mxu0 0.0
        %1014 = vmatpush1.msra.mxu0 0.0
        %1015 = vmatprep.subr.mxu0 0.0
        %1016 = vmatpush1.msra.mxu0 0.0
        %1017 = vmatprep.subr.mxu0 0.0
        %1018 = vmatpush1.msra.mxu0 0.0
        %1019 = vmatprep.subr.mxu0 0.0
        %1020 = vmatpush1.msra.mxu0 0.0
        %1021 = vmatprep.subr.mxu0 0.0
        %1022 = vmatpush1.msra.mxu0 0.0
        %1023 = vmatprep.subr.mxu0 0.0
        %1024 = vmatpush1.msra.mxu0 0.0
        %1025 = vmatprep.subr.mxu0 0.0
        %1026 = vmatpush1.msra.mxu0 0.0
        %1027 = vmatprep.subr.mxu0 0.0
        %1028 = vmatpush1.msra.mxu0 0.0
        %1029 = vmatprep.subr.mxu0 0.0
        %1030 = vmatpush1.msra.mxu0 0.0
        %1031 = vmatprep.subr.mxu0 0.0
        %1032 = vmatpush1.msra.mxu0 0.0
        %1033 = vmatprep.subr.mxu0 0.0
        %1034 = vmatpush1.msra.mxu0 0.0
        %1035 = vmatprep.subr.mxu0 0.0
        %1036 = vmatpush1.msra.mxu0 0.0
        %1037 = vmatprep.subr.mxu0 0.0
        %1038 = vmatpush1.msra.mxu0 0.0
        %1039 = vmatprep.subr.mxu0 0.0
        %1040 = vmatpush1.msra.mxu0 0.0
        %1041 = vmatprep.subr.mxu0 0.0
        %1042 = vmatpush1.msra.mxu0 0.0
        %1043 = vmatprep.subr.mxu0 0.0
        %1044 = vmatpush1.msra.mxu0 0.0
        %1045 = vmatprep.subr.mxu0 0.0
        %1046 = vmatpush1.msra.mxu0 0.0
        %1047 = vmatprep.subr.mxu0 0.0
        %1048 = vmatpush1.msra.mxu0 0.0
        %1049 = vmatprep.subr.mxu0 0.0
        %1050 = vmatpush1.msra.mxu0 0.0
        %1051 = vmatprep.subr.mxu0 0.0
        %1052 = vmatpush1.msra.mxu0 0.0
        %1053 = vmatprep.subr.mxu0 0.0
        %1054 = vmatpush1.msra.mxu0 0.0
        %1055 = vmatprep.subr.mxu0 0.0
        %1056 = vmatpush1.msra.mxu0 0.0
        %1057 = vmatprep.subr.mxu0 0.0
        %1058 = vmatpush1.msra.mxu0 0.0
        %1059 = vmatprep.subr.mxu0 0.0
        %1060 = vmatpush1.msra.mxu0 0.0
        %1061 = vmatprep.subr.mxu0 0.0
        %1062 = vmatpush1.msra.mxu0 0.0
        %1063 = vmatprep.subr.mxu0 0.0
        %1064 = vmatpush1.msra.mxu0 0.0
        %1065 = vmatprep.subr.mxu0 0.0
        %1066 = vmatpush1.msra.mxu0 0.0
        %1067 = vmatprep.subr.mxu0 0.0
        %1068 = vmatpush1.msra.mxu0 0.0
        %1069 = vmatprep.subr.mxu0 0.0
        %1070 = vmatpush1.msra.mxu0 0.0
        %1071 = vmatprep.mubr.f32.mxu0 0.0
        %v1072 = vand.u32 %v628, 4294901760
        %1073 = vmatmul.mubr.f32.gmra.mrb[0].mxu0 %v1072
        %v1074 = vpop.f32.mrb[0].mxu0
        %v1075 = vadd.f32 %v1003, %v1074
        %v1076 = vpop.f32.mrb[0].mxu0
        %1077 = vdwg.mxu0
        %s1078 = scalar_lea.vmem %s1, 16
        %v1079 = vld [vmem:[%s1078] sm:$0xff]
        %1080 = vrot.lane.b32.xlu0 %v166, 126
        %v1081 = vpop.permute.xlu0 %1080
        %v1083 = vsel %vm174, %v1079, 0
        %v1085 = vsel %vm178, %v1081, 0
        %1087 = vmatprep.subr.mxu0 0.0
        %v1088 = vand.u32 %v1085, 4294901760
        %1089 = vmatpush1.msra.mxu0 %v1088
        %1090 = vmatprep.subr.mxu0 0.0
        %1091 = vmatpush1.msra.mxu0 0.0
        %1092 = vmatprep.subr.mxu0 0.0
        %1093 = vmatpush1.msra.mxu0 0.0
        %1094 = vmatprep.subr.mxu0 0.0
        %1095 = vmatpush1.msra.mxu0 0.0
        %1096 = vmatprep.subr.mxu0 0.0
        %1097 = vmatpush1.msra.mxu0 0.0
        %1098 = vmatprep.subr.mxu0 0.0
        %1099 = vmatpush1.msra.mxu0 0.0
        %1100 = vmatprep.subr.mxu0 0.0
        %1101 = vmatpush1.msra.mxu0 0.0
        %1102 = vmatprep.subr.mxu0 0.0
        %1103 = vmatpush1.msra.mxu0 0.0
        %1104 = vmatprep.subr.mxu0 0.0
        %1105 = vmatpush1.msra.mxu0 0.0
        %1106 = vmatprep.subr.mxu0 0.0
        %1107 = vmatpush1.msra.mxu0 0.0
        %1108 = vmatprep.subr.mxu0 0.0
        %1109 = vmatpush1.msra.mxu0 0.0
        %1110 = vmatprep.subr.mxu0 0.0
        %1111 = vmatpush1.msra.mxu0 0.0
        %1112 = vmatprep.subr.mxu0 0.0
        %1113 = vmatpush1.msra.mxu0 0.0
        %1114 = vmatprep.subr.mxu0 0.0
        %1115 = vmatpush1.msra.mxu0 0.0
        %1116 = vmatprep.subr.mxu0 0.0
        %1117 = vmatpush1.msra.mxu0 0.0
        %1118 = vmatprep.subr.mxu0 0.0
        %1119 = vmatpush1.msra.mxu0 0.0
        %1120 = vmatprep.subr.mxu0 0.0
        %1121 = vmatpush1.msra.mxu0 0.0
        %1122 = vmatprep.subr.mxu0 0.0
        %1123 = vmatpush1.msra.mxu0 0.0
        %1124 = vmatprep.subr.mxu0 0.0
        %1125 = vmatpush1.msra.mxu0 0.0
        %1126 = vmatprep.subr.mxu0 0.0
        %1127 = vmatpush1.msra.mxu0 0.0
        %1128 = vmatprep.subr.mxu0 0.0
        %1129 = vmatpush1.msra.mxu0 0.0
        %1130 = vmatprep.subr.mxu0 0.0
        %1131 = vmatpush1.msra.mxu0 0.0
        %1132 = vmatprep.subr.mxu0 0.0
        %1133 = vmatpush1.msra.mxu0 0.0
        %1134 = vmatprep.subr.mxu0 0.0
        %1135 = vmatpush1.msra.mxu0 0.0
        %1136 = vmatprep.subr.mxu0 0.0
        %1137 = vmatpush1.msra.mxu0 0.0
        %1138 = vmatprep.subr.mxu0 0.0
        %1139 = vmatpush1.msra.mxu0 0.0
        %1140 = vmatprep.subr.mxu0 0.0
        %1141 = vmatpush1.msra.mxu0 0.0
        %1142 = vmatprep.subr.mxu0 0.0
        %1143 = vmatpush1.msra.mxu0 0.0
        %1144 = vmatprep.subr.mxu0 0.0
        %1145 = vmatpush1.msra.mxu0 0.0
        %1146 = vmatprep.subr.mxu0 0.0
        %1147 = vmatpush1.msra.mxu0 0.0
        %1148 = vmatprep.subr.mxu0 0.0
        %1149 = vmatpush1.msra.mxu0 0.0
        %1150 = vmatprep.subr.mxu0 0.0
        %1151 = vmatpush1.msra.mxu0 0.0
        %1152 = vmatprep.mubr.f32.mxu0 0.0
        %v1153 = vand.u32 %v1083, 4294901760
        %v1154 = vsub.f32 %v1083, %v1153
        %v1155 = vand.u32 %v1154, 4294901760
        %v1156 = vsub.f32 %v1154, %v1155
        %v1157 = vand.u32 %v1156, 4294901760
        %1158 = vmatmul.mubr.f32.gmra.mrb[0].mxu0 %v1157
        %v1159 = vpop.f32.mrb[0].mxu0
        %v1160 = vadd.f32 0.0, %v1159
        %v1161 = vpop.f32.mrb[0].mxu0
        %1162 = vdwg.mxu0
        %1163 = vmatprep.subr.mxu0 0.0
        %v1164 = vand.u32 %v1085, 4294901760
        %v1165 = vsub.f32 %v1085, %v1164
        %v1166 = vand.u32 %v1165, 4294901760
        %v1167 = vsub.f32 %v1165, %v1166
        %v1168 = vand.u32 %v1167, 4294901760
        %1169 = vmatpush1.msra.mxu0 %v1168
        %1170 = vmatprep.subr.mxu0 0.0
        %1171 = vmatpush1.msra.mxu0 0.0
        %1172 = vmatprep.subr.mxu0 0.0
        %1173 = vmatpush1.msra.mxu0 0.0
        %1174 = vmatprep.subr.mxu0 0.0
        %1175 = vmatpush1.msra.mxu0 0.0
        %1176 = vmatprep.subr.mxu0 0.0
        %1177 = vmatpush1.msra.mxu0 0.0
        %1178 = vmatprep.subr.mxu0 0.0
        %1179 = vmatpush1.msra.mxu0 0.0
        %1180 = vmatprep.subr.mxu0 0.0
        %1181 = vmatpush1.msra.mxu0 0.0
        %1182 = vmatprep.subr.mxu0 0.0
        %1183 = vmatpush1.msra.mxu0 0.0
        %1184 = vmatprep.subr.mxu0 0.0
        %1185 = vmatpush1.msra.mxu0 0.0
        %1186 = vmatprep.subr.mxu0 0.0
        %1187 = vmatpush1.msra.mxu0 0.0
        %1188 = vmatprep.subr.mxu0 0.0
        %1189 = vmatpush1.msra.mxu0 0.0
        %1190 = vmatprep.subr.mxu0 0.0
        %1191 = vmatpush1.msra.mxu0 0.0
        %1192 = vmatprep.subr.mxu0 0.0
        %1193 = vmatpush1.msra.mxu0 0.0
        %1194 = vmatprep.subr.mxu0 0.0
        %1195 = vmatpush1.msra.mxu0 0.0
        %1196 = vmatprep.subr.mxu0 0.0
        %1197 = vmatpush1.msra.mxu0 0.0
        %1198 = vmatprep.subr.mxu0 0.0
        %1199 = vmatpush1.msra.mxu0 0.0
        %1200 = vmatprep.subr.mxu0 0.0
        %1201 = vmatpush1.msra.mxu0 0.0
        %1202 = vmatprep.subr.mxu0 0.0
        %1203 = vmatpush1.msra.mxu0 0.0
        %1204 = vmatprep.subr.mxu0 0.0
        %1205 = vmatpush1.msra.mxu0 0.0
        %1206 = vmatprep.subr.mxu0 0.0
        %1207 = vmatpush1.msra.mxu0 0.0
        %1208 = vmatprep.subr.mxu0 0.0
        %1209 = vmatpush1.msra.mxu0 0.0
        %1210 = vmatprep.subr.mxu0 0.0
        %1211 = vmatpush1.msra.mxu0 0.0
        %1212 = vmatprep.subr.mxu0 0.0
        %1213 = vmatpush1.msra.mxu0 0.0
        %1214 = vmatprep.subr.mxu0 0.0
        %1215 = vmatpush1.msra.mxu0 0.0
        %1216 = vmatprep.subr.mxu0 0.0
        %1217 = vmatpush1.msra.mxu0 0.0
        %1218 = vmatprep.subr.mxu0 0.0
        %1219 = vmatpush1.msra.mxu0 0.0
        %1220 = vmatprep.subr.mxu0 0.0
        %1221 = vmatpush1.msra.mxu0 0.0
        %1222 = vmatprep.subr.mxu0 0.0
        %1223 = vmatpush1.msra.mxu0 0.0
        %1224 = vmatprep.subr.mxu0 0.0
        %1225 = vmatpush1.msra.mxu0 0.0
        %1226 = vmatprep.subr.mxu0 0.0
        %1227 = vmatpush1.msra.mxu0 0.0
        %1228 = vmatprep.subr.mxu0 0.0
        %1229 = vmatpush1.msra.mxu0 0.0
        %1230 = vmatprep.subr.mxu0 0.0
        %1231 = vmatpush1.msra.mxu0 0.0
        %1232 = vmatprep.mubr.f32.mxu0 0.0
        %v1233 = vand.u32 %v1083, 4294901760
        %1234 = vmatmul.mubr.f32.gmra.mrb[0].mxu0 %v1233
        %v1235 = vpop.f32.mrb[0].mxu0
        %v1236 = vadd.f32 %v1160, %v1235
        %v1237 = vpop.f32.mrb[0].mxu0
        %1238 = vdwg.mxu0
        %1239 = vmatprep.subr.mxu0 0.0
        %v1240 = vand.u32 %v1085, 4294901760
        %v1241 = vsub.f32 %v1085, %v1240
        %1242 = vmatpush1.msra.mxu0 %v1241
        %1243 = vmatprep.subr.mxu0 0.0
        %1244 = vmatpush1.msra.mxu0 0.0
        %1245 = vmatprep.subr.mxu0 0.0
        %1246 = vmatpush1.msra.mxu0 0.0
        %1247 = vmatprep.subr.mxu0 0.0
        %1248 = vmatpush1.msra.mxu0 0.0
        %1249 = vmatprep.subr.mxu0 0.0
        %1250 = vmatpush1.msra.mxu0 0.0
        %1251 = vmatprep.subr.mxu0 0.0
        %1252 = vmatpush1.msra.mxu0 0.0
        %1253 = vmatprep.subr.mxu0 0.0
        %1254 = vmatpush1.msra.mxu0 0.0
        %1255 = vmatprep.subr.mxu0 0.0
        %1256 = vmatpush1.msra.mxu0 0.0
        %1257 = vmatprep.subr.mxu0 0.0
        %1258 = vmatpush1.msra.mxu0 0.0
        %1259 = vmatprep.subr.mxu0 0.0
        %1260 = vmatpush1.msra.mxu0 0.0
        %1261 = vmatprep.subr.mxu0 0.0
        %1262 = vmatpush1.msra.mxu0 0.0
        %1263 = vmatprep.subr.mxu0 0.0
        %1264 = vmatpush1.msra.mxu0 0.0
        %1265 = vmatprep.subr.mxu0 0.0
        %1266 = vmatpush1.msra.mxu0 0.0
        %1267 = vmatprep.subr.mxu0 0.0
        %1268 = vmatpush1.msra.mxu0 0.0
        %1269 = vmatprep.subr.mxu0 0.0
        %1270 = vmatpush1.msra.mxu0 0.0
        %1271 = vmatprep.subr.mxu0 0.0
        %1272 = vmatpush1.msra.mxu0 0.0
        %1273 = vmatprep.subr.mxu0 0.0
        %1274 = vmatpush1.msra.mxu0 0.0
        %1275 = vmatprep.subr.mxu0 0.0
        %1276 = vmatpush1.msra.mxu0 0.0
        %1277 = vmatprep.subr.mxu0 0.0
        %1278 = vmatpush1.msra.mxu0 0.0
        %1279 = vmatprep.subr.mxu0 0.0
        %1280 = vmatpush1.msra.mxu0 0.0
        %1281 = vmatprep.subr.mxu0 0.0
        %1282 = vmatpush1.msra.mxu0 0.0
        %1283 = vmatprep.subr.mxu0 0.0
        %1284 = vmatpush1.msra.mxu0 0.0
        %1285 = vmatprep.subr.mxu0 0.0
        %1286 = vmatpush1.msra.mxu0 0.0
        %1287 = vmatprep.subr.mxu0 0.0
        %1288 = vmatpush1.msra.mxu0 0.0
        %1289 = vmatprep.subr.mxu0 0.0
        %1290 = vmatpush1.msra.mxu0 0.0
        %1291 = vmatprep.subr.mxu0 0.0
        %1292 = vmatpush1.msra.mxu0 0.0
        %1293 = vmatprep.subr.mxu0 0.0
        %1294 = vmatpush1.msra.mxu0 0.0
        %1295 = vmatprep.subr.mxu0 0.0
        %1296 = vmatpush1.msra.mxu0 0.0
        %1297 = vmatprep.subr.mxu0 0.0
        %1298 = vmatpush1.msra.mxu0 0.0
        %1299 = vmatprep.subr.mxu0 0.0
        %1300 = vmatpush1.msra.mxu0 0.0
        %1301 = vmatprep.subr.mxu0 0.0
        %1302 = vmatpush1.msra.mxu0 0.0
        %1303 = vmatprep.subr.mxu0 0.0
        %1304 = vmatpush1.msra.mxu0 0.0
        %1305 = vmatprep.mubr.f32.mxu0 0.0
        %v1306 = vand.u32 %v1083, 4294901760
        %v1307 = vsub.f32 %v1083, %v1306
        %1308 = vmatmul.mubr.f32.gmra.mrb[0].mxu0 %v1307
        %v1309 = vpop.f32.mrb[0].mxu0
        %v1310 = vadd.f32 %v1236, %v1309
        %v1311 = vpop.f32.mrb[0].mxu0
        %1312 = vdwg.mxu0
        %1313 = vmatprep.subr.mxu0 0.0
        %v1314 = vand.u32 %v1085, 4294901760
        %1315 = vmatpush1.msra.mxu0 %v1314
        %1316 = vmatprep.subr.mxu0 0.0
        %1317 = vmatpush1.msra.mxu0 0.0
        %1318 = vmatprep.subr.mxu0 0.0
        %1319 = vmatpush1.msra.mxu0 0.0
        %1320 = vmatprep.subr.mxu0 0.0
        %1321 = vmatpush1.msra.mxu0 0.0
        %1322 = vmatprep.subr.mxu0 0.0
        %1323 = vmatpush1.msra.mxu0 0.0
        %1324 = vmatprep.subr.mxu0 0.0
        %1325 = vmatpush1.msra.mxu0 0.0
        %1326 = vmatprep.subr.mxu0 0.0
        %1327 = vmatpush1.msra.mxu0 0.0
        %1328 = vmatprep.subr.mxu0 0.0
        %1329 = vmatpush1.msra.mxu0 0.0
        %1330 = vmatprep.subr.mxu0 0.0
        %1331 = vmatpush1.msra.mxu0 0.0
        %1332 = vmatprep.subr.mxu0 0.0
        %1333 = vmatpush1.msra.mxu0 0.0
        %1334 = vmatprep.subr.mxu0 0.0
        %1335 = vmatpush1.msra.mxu0 0.0
        %1336 = vmatprep.subr.mxu0 0.0
        %1337 = vmatpush1.msra.mxu0 0.0
        %1338 = vmatprep.subr.mxu0 0.0
        %1339 = vmatpush1.msra.mxu0 0.0
        %1340 = vmatprep.subr.mxu0 0.0
        %1341 = vmatpush1.msra.mxu0 0.0
        %1342 = vmatprep.subr.mxu0 0.0
        %1343 = vmatpush1.msra.mxu0 0.0
        %1344 = vmatprep.subr.mxu0 0.0
        %1345 = vmatpush1.msra.mxu0 0.0
        %1346 = vmatprep.subr.mxu0 0.0
        %1347 = vmatpush1.msra.mxu0 0.0
        %1348 = vmatprep.subr.mxu0 0.0
        %1349 = vmatpush1.msra.mxu0 0.0
        %1350 = vmatprep.subr.mxu0 0.0
        %1351 = vmatpush1.msra.mxu0 0.0
        %1352 = vmatprep.subr.mxu0 0.0
        %1353 = vmatpush1.msra.mxu0 0.0
        %1354 = vmatprep.subr.mxu0 0.0
        %1355 = vmatpush1.msra.mxu0 0.0
        %1356 = vmatprep.subr.mxu0 0.0
        %1357 = vmatpush1.msra.mxu0 0.0
        %1358 = vmatprep.subr.mxu0 0.0
        %1359 = vmatpush1.msra.mxu0 0.0
        %1360 = vmatprep.subr.mxu0 0.0
        %1361 = vmatpush1.msra.mxu0 0.0
        %1362 = vmatprep.subr.mxu0 0.0
        %1363 = vmatpush1.msra.mxu0 0.0
        %1364 = vmatprep.subr.mxu0 0.0
        %1365 = vmatpush1.msra.mxu0 0.0
        %1366 = vmatprep.subr.mxu0 0.0
        %1367 = vmatpush1.msra.mxu0 0.0
        %1368 = vmatprep.subr.mxu0 0.0
        %1369 = vmatpush1.msra.mxu0 0.0
        %1370 = vmatprep.subr.mxu0 0.0
        %1371 = vmatpush1.msra.mxu0 0.0
        %1372 = vmatprep.subr.mxu0 0.0
        %1373 = vmatpush1.msra.mxu0 0.0
        %1374 = vmatprep.subr.mxu0 0.0
        %1375 = vmatpush1.msra.mxu0 0.0
        %1376 = vmatprep.subr.mxu0 0.0
        %1377 = vmatpush1.msra.mxu0 0.0
        %1378 = vmatprep.mubr.f32.mxu0 0.0
        %v1379 = vand.u32 %v1083, 4294901760
        %v1380 = vsub.f32 %v1083, %v1379
        %v1381 = vand.u32 %v1380, 4294901760
        %1382 = vmatmul.mubr.f32.gmra.mrb[0].mxu0 %v1381
        %v1383 = vpop.f32.mrb[0].mxu0
        %v1384 = vadd.f32 %v1310, %v1383
        %v1385 = vpop.f32.mrb[0].mxu0
        %1386 = vdwg.mxu0
        %1387 = vmatprep.subr.mxu0 0.0
        %v1388 = vand.u32 %v1085, 4294901760
        %v1389 = vsub.f32 %v1085, %v1388
        %v1390 = vand.u32 %v1389, 4294901760
        %1391 = vmatpush1.msra.mxu0 %v1390
        %1392 = vmatprep.subr.mxu0 0.0
        %1393 = vmatpush1.msra.mxu0 0.0
        %1394 = vmatprep.subr.mxu0 0.0
        %1395 = vmatpush1.msra.mxu0 0.0
        %1396 = vmatprep.subr.mxu0 0.0
        %1397 = vmatpush1.msra.mxu0 0.0
        %1398 = vmatprep.subr.mxu0 0.0
        %1399 = vmatpush1.msra.mxu0 0.0
        %1400 = vmatprep.subr.mxu0 0.0
        %1401 = vmatpush1.msra.mxu0 0.0
        %1402 = vmatprep.subr.mxu0 0.0
        %1403 = vmatpush1.msra.mxu0 0.0
        %1404 = vmatprep.subr.mxu0 0.0
        %1405 = vmatpush1.msra.mxu0 0.0
        %1406 = vmatprep.subr.mxu0 0.0
        %1407 = vmatpush1.msra.mxu0 0.0
        %1408 = vmatprep.subr.mxu0 0.0
        %1409 = vmatpush1.msra.mxu0 0.0
        %1410 = vmatprep.subr.mxu0 0.0
        %1411 = vmatpush1.msra.mxu0 0.0
        %1412 = vmatprep.subr.mxu0 0.0
        %1413 = vmatpush1.msra.mxu0 0.0
        %1414 = vmatprep.subr.mxu0 0.0
        %1415 = vmatpush1.msra.mxu0 0.0
        %1416 = vmatprep.subr.mxu0 0.0
        %1417 = vmatpush1.msra.mxu0 0.0
        %1418 = vmatprep.subr.mxu0 0.0
        %1419 = vmatpush1.msra.mxu0 0.0
        %1420 = vmatprep.subr.mxu0 0.0
        %1421 = vmatpush1.msra.mxu0 0.0
        %1422 = vmatprep.subr.mxu0 0.0
        %1423 = vmatpush1.msra.mxu0 0.0
        %1424 = vmatprep.subr.mxu0 0.0
        %1425 = vmatpush1.msra.mxu0 0.0
        %1426 = vmatprep.subr.mxu0 0.0
        %1427 = vmatpush1.msra.mxu0 0.0
        %1428 = vmatprep.subr.mxu0 0.0
        %1429 = vmatpush1.msra.mxu0 0.0
        %1430 = vmatprep.subr.mxu0 0.0
        %1431 = vmatpush1.msra.mxu0 0.0
        %1432 = vmatprep.subr.mxu0 0.0
        %1433 = vmatpush1.msra.mxu0 0.0
        %1434 = vmatprep.subr.mxu0 0.0
        %1435 = vmatpush1.msra.mxu0 0.0
        %1436 = vmatprep.subr.mxu0 0.0
        %1437 = vmatpush1.msra.mxu0 0.0
        %1438 = vmatprep.subr.mxu0 0.0
        %1439 = vmatpush1.msra.mxu0 0.0
        %1440 = vmatprep.subr.mxu0 0.0
        %1441 = vmatpush1.msra.mxu0 0.0
        %1442 = vmatprep.subr.mxu0 0.0
        %1443 = vmatpush1.msra.mxu0 0.0
        %1444 = vmatprep.subr.mxu0 0.0
        %1445 = vmatpush1.msra.mxu0 0.0
        %1446 = vmatprep.subr.mxu0 0.0
        %1447 = vmatpush1.msra.mxu0 0.0
        %1448 = vmatprep.subr.mxu0 0.0
        %1449 = vmatpush1.msra.mxu0 0.0
        %1450 = vmatprep.subr.mxu0 0.0
        %1451 = vmatpush1.msra.mxu0 0.0
        %1452 = vmatprep.subr.mxu0 0.0
        %1453 = vmatpush1.msra.mxu0 0.0
        %1454 = vmatprep.mubr.f32.mxu0 0.0
        %v1455 = vand.u32 %v1083, 4294901760
        %1456 = vmatmul.mubr.f32.gmra.mrb[0].mxu0 %v1455
        %v1457 = vpop.f32.mrb[0].mxu0
        %v1458 = vadd.f32 %v1384, %v1457
        %v1459 = vpop.f32.mrb[0].mxu0
        %1460 = vdwg.mxu0
        %1461 = vmatprep.subr.mxu0 0.0
        %v1462 = vand.u32 %v1085, 4294901760
        %1463 = vmatpush1.msra.mxu0 %v1462
        %1464 = vmatprep.subr.mxu0 0.0
        %1465 = vmatpush1.msra.mxu0 0.0
        %1466 = vmatprep.subr.mxu0 0.0
        %1467 = vmatpush1.msra.mxu0 0.0
        %1468 = vmatprep.subr.mxu0 0.0
        %1469 = vmatpush1.msra.mxu0 0.0
        %1470 = vmatprep.subr.mxu0 0.0
        %1471 = vmatpush1.msra.mxu0 0.0
        %1472 = vmatprep.subr.mxu0 0.0
        %1473 = vmatpush1.msra.mxu0 0.0
        %1474 = vmatprep.subr.mxu0 0.0
        %1475 = vmatpush1.msra.mxu0 0.0
        %1476 = vmatprep.subr.mxu0 0.0
        %1477 = vmatpush1.msra.mxu0 0.0
        %1478 = vmatprep.subr.mxu0 0.0
        %1479 = vmatpush1.msra.mxu0 0.0
        %1480 = vmatprep.subr.mxu0 0.0
        %1481 = vmatpush1.msra.mxu0 0.0
        %1482 = vmatprep.subr.mxu0 0.0
        %1483 = vmatpush1.msra.mxu0 0.0
        %1484 = vmatprep.subr.mxu0 0.0
        %1485 = vmatpush1.msra.mxu0 0.0
        %1486 = vmatprep.subr.mxu0 0.0
        %1487 = vmatpush1.msra.mxu0 0.0
        %1488 = vmatprep.subr.mxu0 0.0
        %1489 = vmatpush1.msra.mxu0 0.0
        %1490 = vmatprep.subr.mxu0 0.0
        %1491 = vmatpush1.msra.mxu0 0.0
        %1492 = vmatprep.subr.mxu0 0.0
        %1493 = vmatpush1.msra.mxu0 0.0
        %1494 = vmatprep.subr.mxu0 0.0
        %1495 = vmatpush1.msra.mxu0 0.0
        %1496 = vmatprep.subr.mxu0 0.0
        %1497 = vmatpush1.msra.mxu0 0.0
        %1498 = vmatprep.subr.mxu0 0.0
        %1499 = vmatpush1.msra.mxu0 0.0
        %1500 = vmatprep.subr.mxu0 0.0
        %1501 = vmatpush1.msra.mxu0 0.0
        %1502 = vmatprep.subr.mxu0 0.0
        %1503 = vmatpush1.msra.mxu0 0.0
        %1504 = vmatprep.subr.mxu0 0.0
        %1505 = vmatpush1.msra.mxu0 0.0
        %1506 = vmatprep.subr.mxu0 0.0
        %1507 = vmatpush1.msra.mxu0 0.0
        %1508 = vmatprep.subr.mxu0 0.0
        %1509 = vmatpush1.msra.mxu0 0.0
        %1510 = vmatprep.subr.mxu0 0.0
        %1511 = vmatpush1.msra.mxu0 0.0
        %1512 = vmatprep.subr.mxu0 0.0
        %1513 = vmatpush1.msra.mxu0 0.0
        %1514 = vmatprep.subr.mxu0 0.0
        %1515 = vmatpush1.msra.mxu0 0.0
        %1516 = vmatprep.subr.mxu0 0.0
        %1517 = vmatpush1.msra.mxu0 0.0
        %1518 = vmatprep.subr.mxu0 0.0
        %1519 = vmatpush1.msra.mxu0 0.0
        %1520 = vmatprep.subr.mxu0 0.0
        %1521 = vmatpush1.msra.mxu0 0.0
        %1522 = vmatprep.subr.mxu0 0.0
        %1523 = vmatpush1.msra.mxu0 0.0
        %1524 = vmatprep.subr.mxu0 0.0
        %1525 = vmatpush1.msra.mxu0 0.0
        %1526 = vmatprep.mubr.f32.mxu0 0.0
        %v1527 = vand.u32 %v1083, 4294901760
        %1528 = vmatmul.mubr.f32.gmra.mrb[0].mxu0 %v1527
        %v1529 = vpop.f32.mrb[0].mxu0
        %v1530 = vadd.f32 %v1458, %v1529
        %v1531 = vpop.f32.mrb[0].mxu0
        %1532 = vdwg.mxu0
        %v1533 = vadd.f32 %v1075, %v1530
        %1535 = vset.pattern.permute.xlu0 0
        %1536 = vperm.xlu0 %1535, %v167
        %v1537 = vpop.permute.xlu0 %1536
        %v1539 = vadd.f32 %v1533, %v1537
        %v1540 = vmax.f32 %v1539, 0.0
        %1542 = vrot.lane.b32.xlu0 %v1540, 127
        %v1543 = vpop.permute.xlu0 %1542
        %v1545 = vmax.f32 %v1540, %v1543
        %v1546 = vlaneseq
        %v1547 = vshrl.u32 %v1546, 7
        %v1548 = vadd.s32 %v1547, 8
        %v1549 = vlaneseq
        %v1550 = vand.u32 %v1549, 127
        %v1551 = vmul.u32 %v1550, 2
        %vm1552 = vcmp.eq.s32.totalorder %v1547, %v1551
        %vm1553 = vcmp.eq.s32.totalorder %v1548, %v1551
        %v1554 = vsel %vm1552, 1, 0
        %v1555 = vsel %vm1553, 1, 0
        %v1556 = vcvt.s32.f32 %v1554
        %v1557 = vcvt.s32.f32 %v1555
        %vm1558 = vcmask 121856
        %v1560 = vsel %vm1558, %v1545, 0
        %vm1562 = vcmask 1046528
        %v1564 = vsel %vm1562, %v1557, 0
        %1566 = vmatprep.subr.mxu0 0.0
        %v1567 = vand.u32 %v1556, 4294901760
        %1568 = vmatpush1.msra.mxu0 %v1567
        %1569 = vmatprep.subr.mxu0 0.0
        %v1570 = vand.u32 %v1564, 4294901760
        %1571 = vmatpush1.msra.mxu0 %v1570
        %1572 = vmatprep.subr.mxu0 0.0
        %1573 = vmatpush1.msra.mxu0 0.0
        %1574 = vmatprep.subr.mxu0 0.0
        %1575 = vmatpush1.msra.mxu0 0.0
        %1576 = vmatprep.subr.mxu0 0.0
        %1577 = vmatpush1.msra.mxu0 0.0
        %1578 = vmatprep.subr.mxu0 0.0
        %1579 = vmatpush1.msra.mxu0 0.0
        %1580 = vmatprep.subr.mxu0 0.0
        %1581 = vmatpush1.msra.mxu0 0.0
        %1582 = vmatprep.subr.mxu0 0.0
        %1583 = vmatpush1.msra.mxu0 0.0
        %1584 = vmatprep.subr.mxu0 0.0
        %1585 = vmatpush1.msra.mxu0 0.0
        %1586 = vmatprep.subr.mxu0 0.0
        %1587 = vmatpush1.msra.mxu0 0.0
        %1588 = vmatprep.subr.mxu0 0.0
        %1589 = vmatpush1.msra.mxu0 0.0
        %1590 = vmatprep.subr.mxu0 0.0
        %1591 = vmatpush1.msra.mxu0 0.0
        %1592 = vmatprep.subr.mxu0 0.0
        %1593 = vmatpush1.msra.mxu0 0.0
        %1594 = vmatprep.subr.mxu0 0.0
        %1595 = vmatpush1.msra.mxu0 0.0
        %1596 = vmatprep.subr.mxu0 0.0
        %1597 = vmatpush1.msra.mxu0 0.0
        %1598 = vmatprep.subr.mxu0 0.0
        %1599 = vmatpush1.msra.mxu0 0.0
        %1600 = vmatprep.subr.mxu0 0.0
        %1601 = vmatpush1.msra.mxu0 0.0
        %1602 = vmatprep.subr.mxu0 0.0
        %1603 = vmatpush1.msra.mxu0 0.0
        %1604 = vmatprep.subr.mxu0 0.0
        %1605 = vmatpush1.msra.mxu0 0.0
        %1606 = vmatprep.subr.mxu0 0.0
        %1607 = vmatpush1.msra.mxu0 0.0
        %1608 = vmatprep.subr.mxu0 0.0
        %1609 = vmatpush1.msra.mxu0 0.0
        %1610 = vmatprep.subr.mxu0 0.0
        %1611 = vmatpush1.msra.mxu0 0.0
        %1612 = vmatprep.subr.mxu0 0.0
        %1613 = vmatpush1.msra.mxu0 0.0
        %1614 = vmatprep.subr.mxu0 0.0
        %1615 = vmatpush1.msra.mxu0 0.0
        %1616 = vmatprep.subr.mxu0 0.0
        %1617 = vmatpush1.msra.mxu0 0.0
        %1618 = vmatprep.subr.mxu0 0.0
        %1619 = vmatpush1.msra.mxu0 0.0
        %1620 = vmatprep.subr.mxu0 0.0
        %1621 = vmatpush1.msra.mxu0 0.0
        %1622 = vmatprep.subr.mxu0 0.0
        %1623 = vmatpush1.msra.mxu0 0.0
        %1624 = vmatprep.subr.mxu0 0.0
        %1625 = vmatpush1.msra.mxu0 0.0
        %1626 = vmatprep.subr.mxu0 0.0
        %1627 = vmatpush1.msra.mxu0 0.0
        %1628 = vmatprep.subr.mxu0 0.0
        %1629 = vmatpush1.msra.mxu0 0.0
        %1630 = vmatprep.subr.mxu0 0.0
        %1631 = vmatpush1.msra.mxu0 0.0
        %1632 = vmatprep.mubr.f32.mxu0 0.0
        %v1633 = vand.u32 %v1560, 4294901760
        %v1634 = vsub.f32 %v1560, %v1633
        %v1635 = vand.u32 %v1634, 4294901760
        %v1636 = vsub.f32 %v1634, %v1635
        %v1637 = vand.u32 %v1636, 4294901760
        %1638 = vmatmul.mubr.f32.gmra.mrb[0].mxu0 %v1637
        %v1639 = vpop.f32.mrb[0].mxu0
        %v1640 = vadd.f32 0.0, %v1639
        %v1641 = vpop.f32.mrb[0].mxu0
        %1642 = vdwg.mxu0
        %1643 = vmatprep.subr.mxu0 0.0
        %v1644 = vand.u32 %v1556, 4294901760
        %v1645 = vsub.f32 %v1556, %v1644
        %v1646 = vand.u32 %v1645, 4294901760
        %v1647 = vsub.f32 %v1645, %v1646
        %v1648 = vand.u32 %v1647, 4294901760
        %1649 = vmatpush1.msra.mxu0 %v1648
        %1650 = vmatprep.subr.mxu0 0.0
        %v1651 = vand.u32 %v1564, 4294901760
        %v1652 = vsub.f32 %v1564, %v1651
        %v1653 = vand.u32 %v1652, 4294901760
        %v1654 = vsub.f32 %v1652, %v1653
        %v1655 = vand.u32 %v1654, 4294901760
        %1656 = vmatpush1.msra.mxu0 %v1655
        %1657 = vmatprep.subr.mxu0 0.0
        %1658 = vmatpush1.msra.mxu0 0.0
        %1659 = vmatprep.subr.mxu0 0.0
        %1660 = vmatpush1.msra.mxu0 0.0
        %1661 = vmatprep.subr.mxu0 0.0
        %1662 = vmatpush1.msra.mxu0 0.0
        %1663 = vmatprep.subr.mxu0 0.0
        %1664 = vmatpush1.msra.mxu0 0.0
        %1665 = vmatprep.subr.mxu0 0.0
        %1666 = vmatpush1.msra.mxu0 0.0
        %1667 = vmatprep.subr.mxu0 0.0
        %1668 = vmatpush1.msra.mxu0 0.0
        %1669 = vmatprep.subr.mxu0 0.0
        %1670 = vmatpush1.msra.mxu0 0.0
        %1671 = vmatprep.subr.mxu0 0.0
        %1672 = vmatpush1.msra.mxu0 0.0
        %1673 = vmatprep.subr.mxu0 0.0
        %1674 = vmatpush1.msra.mxu0 0.0
        %1675 = vmatprep.subr.mxu0 0.0
        %1676 = vmatpush1.msra.mxu0 0.0
        %1677 = vmatprep.subr.mxu0 0.0
        %1678 = vmatpush1.msra.mxu0 0.0
        %1679 = vmatprep.subr.mxu0 0.0
        %1680 = vmatpush1.msra.mxu0 0.0
        %1681 = vmatprep.subr.mxu0 0.0
        %1682 = vmatpush1.msra.mxu0 0.0
        %1683 = vmatprep.subr.mxu0 0.0
        %1684 = vmatpush1.msra.mxu0 0.0
        %1685 = vmatprep.subr.mxu0 0.0
        %1686 = vmatpush1.msra.mxu0 0.0
        %1687 = vmatprep.subr.mxu0 0.0
        %1688 = vmatpush1.msra.mxu0 0.0
        %1689 = vmatprep.subr.mxu0 0.0
        %1690 = vmatpush1.msra.mxu0 0.0
        %1691 = vmatprep.subr.mxu0 0.0
        %1692 = vmatpush1.msra.mxu0 0.0
        %1693 = vmatprep.subr.mxu0 0.0
        %1694 = vmatpush1.msra.mxu0 0.0
        %1695 = vmatprep.subr.mxu0 0.0
        %1696 = vmatpush1.msra.mxu0 0.0
        %1697 = vmatprep.subr.mxu0 0.0
        %1698 = vmatpush1.msra.mxu0 0.0
        %1699 = vmatprep.subr.mxu0 0.0
        %1700 = vmatpush1.msra.mxu0 0.0
        %1701 = vmatprep.subr.mxu0 0.0
        %1702 = vmatpush1.msra.mxu0 0.0
        %1703 = vmatprep.subr.mxu0 0.0
        %1704 = vmatpush1.msra.mxu0 0.0
        %1705 = vmatprep.subr.mxu0 0.0
        %1706 = vmatpush1.msra.mxu0 0.0
        %1707 = vmatprep.subr.mxu0 0.0
        %1708 = vmatpush1.msra.mxu0 0.0
        %1709 = vmatprep.subr.mxu0 0.0
        %1710 = vmatpush1.msra.mxu0 0.0
        %1711 = vmatprep.subr.mxu0 0.0
        %1712 = vmatpush1.msra.mxu0 0.0
        %1713 = vmatprep.subr.mxu0 0.0
        %1714 = vmatpush1.msra.mxu0 0.0
        %1715 = vmatprep.subr.mxu0 0.0
        %1716 = vmatpush1.msra.mxu0 0.0
        %1717 = vmatprep.mubr.f32.mxu0 0.0
        %v1718 = vand.u32 %v1560, 4294901760
        %1719 = vmatmul.mubr.f32.gmra.mrb[0].mxu0 %v1718
        %v1720 = vpop.f32.mrb[0].mxu0
        %v1721 = vadd.f32 %v1640, %v1720
        %v1722 = vpop.f32.mrb[0].mxu0
        %1723 = vdwg.mxu0
        %1724 = vmatprep.subr.mxu0 0.0
        %v1725 = vand.u32 %v1556, 4294901760
        %v1726 = vsub.f32 %v1556, %v1725
        %1727 = vmatpush1.msra.mxu0 %v1726
        %1728 = vmatprep.subr.mxu0 0.0
        %v1729 = vand.u32 %v1564, 4294901760
        %v1730 = vsub.f32 %v1564, %v1729
        %1731 = vmatpush1.msra.mxu0 %v1730
        %1732 = vmatprep.subr.mxu0 0.0
        %1733 = vmatpush1.msra.mxu0 0.0
        %1734 = vmatprep.subr.mxu0 0.0
        %1735 = vmatpush1.msra.mxu0 0.0
        %1736 = vmatprep.subr.mxu0 0.0
        %1737 = vmatpush1.msra.mxu0 0.0
        %1738 = vmatprep.subr.mxu0 0.0
        %1739 = vmatpush1.msra.mxu0 0.0
        %1740 = vmatprep.subr.mxu0 0.0
        %1741 = vmatpush1.msra.mxu0 0.0
        %1742 = vmatprep.subr.mxu0 0.0
        %1743 = vmatpush1.msra.mxu0 0.0
        %1744 = vmatprep.subr.mxu0 0.0
        %1745 = vmatpush1.msra.mxu0 0.0
        %1746 = vmatprep.subr.mxu0 0.0
        %1747 = vmatpush1.msra.mxu0 0.0
        %1748 = vmatprep.subr.mxu0 0.0
        %1749 = vmatpush1.msra.mxu0 0.0
        %1750 = vmatprep.subr.mxu0 0.0
        %1751 = vmatpush1.msra.mxu0 0.0
        %1752 = vmatprep.subr.mxu0 0.0
        %1753 = vmatpush1.msra.mxu0 0.0
        %1754 = vmatprep.subr.mxu0 0.0
        %1755 = vmatpush1.msra.mxu0 0.0
        %1756 = vmatprep.subr.mxu0 0.0
        %1757 = vmatpush1.msra.mxu0 0.0
        %1758 = vmatprep.subr.mxu0 0.0
        %1759 = vmatpush1.msra.mxu0 0.0
        %1760 = vmatprep.subr.mxu0 0.0
        %1761 = vmatpush1.msra.mxu0 0.0
        %1762 = vmatprep.subr.mxu0 0.0
        %1763 = vmatpush1.msra.mxu0 0.0
        %1764 = vmatprep.subr.mxu0 0.0
        %1765 = vmatpush1.msra.mxu0 0.0
        %1766 = vmatprep.subr.mxu0 0.0
        %1767 = vmatpush1.msra.mxu0 0.0
        %1768 = vmatprep.subr.mxu0 0.0
        %1769 = vmatpush1.msra.mxu0 0.0
        %1770 = vmatprep.subr.mxu0 0.0
        %1771 = vmatpush1.msra.mxu0 0.0
        %1772 = vmatprep.subr.mxu0 0.0
        %1773 = vmatpush1.msra.mxu0 0.0
        %1774 = vmatprep.subr.mxu0 0.0
        %1775 = vmatpush1.msra.mxu0 0.0
        %1776 = vmatprep.subr.mxu0 0.0
        %1777 = vmatpush1.msra.mxu0 0.0
        %1778 = vmatprep.subr.mxu0 0.0
        %1779 = vmatpush1.msra.mxu0 0.0
        %1780 = vmatprep.subr.mxu0 0.0
        %1781 = vmatpush1.msra.mxu0 0.0
        %1782 = vmatprep.subr.mxu0 0.0
        %1783 = vmatpush1.msra.mxu0 0.0
        %1784 = vmatprep.subr.mxu0 0.0
        %1785 = vmatpush1.msra.mxu0 0.0
        %1786 = vmatprep.subr.mxu0 0.0
        %1787 = vmatpush1.msra.mxu0 0.0
        %1788 = vmatprep.subr.mxu0 0.0
        %1789 = vmatpush1.msra.mxu0 0.0
        %1790 = vmatprep.subr.mxu0 0.0
        %1791 = vmatpush1.msra.mxu0 0.0
        %1792 = vmatprep.mubr.f32.mxu0 0.0
        %v1793 = vand.u32 %v1560, 4294901760
        %v1794 = vsub.f32 %v1560, %v1793
        %1795 = vmatmul.mubr.f32.gmra.mrb[0].mxu0 %v1794
        %v1796 = vpop.f32.mrb[0].mxu0
        %v1797 = vadd.f32 %v1721, %v1796
        %v1798 = vpop.f32.mrb[0].mxu0
        %1799 = vdwg.mxu0
        %1800 = vmatprep.subr.mxu0 0.0
        %v1801 = vand.u32 %v1556, 4294901760
        %1802 = vmatpush1.msra.mxu0 %v1801
        %1803 = vmatprep.subr.mxu0 0.0
        %v1804 = vand.u32 %v1564, 4294901760
        %1805 = vmatpush1.msra.mxu0 %v1804
        %1806 = vmatprep.subr.mxu0 0.0
        %1807 = vmatpush1.msra.mxu0 0.0
        %1808 = vmatprep.subr.mxu0 0.0
        %1809 = vmatpush1.msra.mxu0 0.0
        %1810 = vmatprep.subr.mxu0 0.0
        %1811 = vmatpush1.msra.mxu0 0.0
        %1812 = vmatprep.subr.mxu0 0.0
        %1813 = vmatpush1.msra.mxu0 0.0
        %1814 = vmatprep.subr.mxu0 0.0
        %1815 = vmatpush1.msra.mxu0 0.0
        %1816 = vmatprep.subr.mxu0 0.0
        %1817 = vmatpush1.msra.mxu0 0.0
        %1818 = vmatprep.subr.mxu0 0.0
        %1819 = vmatpush1.msra.mxu0 0.0
        %1820 = vmatprep.subr.mxu0 0.0
        %1821 = vmatpush1.msra.mxu0 0.0
        %1822 = vmatprep.subr.mxu0 0.0
        %1823 = vmatpush1.msra.mxu0 0.0
        %1824 = vmatprep.subr.mxu0 0.0
        %1825 = vmatpush1.msra.mxu0 0.0
        %1826 = vmatprep.subr.mxu0 0.0
        %1827 = vmatpush1.msra.mxu0 0.0
        %1828 = vmatprep.subr.mxu0 0.0
        %1829 = vmatpush1.msra.mxu0 0.0
        %1830 = vmatprep.subr.mxu0 0.0
        %1831 = vmatpush1.msra.mxu0 0.0
        %1832 = vmatprep.subr.mxu0 0.0
        %1833 = vmatpush1.msra.mxu0 0.0
        %1834 = vmatprep.subr.mxu0 0.0
        %1835 = vmatpush1.msra.mxu0 0.0
        %1836 = vmatprep.subr.mxu0 0.0
        %1837 = vmatpush1.msra.mxu0 0.0
        %1838 = vmatprep.subr.mxu0 0.0
        %1839 = vmatpush1.msra.mxu0 0.0
        %1840 = vmatprep.subr.mxu0 0.0
        %1841 = vmatpush1.msra.mxu0 0.0
        %1842 = vmatprep.subr.mxu0 0.0
        %1843 = vmatpush1.msra.mxu0 0.0
        %1844 = vmatprep.subr.mxu0 0.0
        %1845 = vmatpush1.msra.mxu0 0.0
        %1846 = vmatprep.subr.mxu0 0.0
        %1847 = vmatpush1.msra.mxu0 0.0
        %1848 = vmatprep.subr.mxu0 0.0
        %1849 = vmatpush1.msra.mxu0 0.0
        %1850 = vmatprep.subr.mxu0 0.0
        %1851 = vmatpush1.msra.mxu0 0.0
        %1852 = vmatprep.subr.mxu0 0.0
        %1853 = vmatpush1.msra.mxu0 0.0
        %1854 = vmatprep.subr.mxu0 0.0
        %1855 = vmatpush1.msra.mxu0 0.0
        %1856 = vmatprep.subr.mxu0 0.0
        %1857 = vmatpush1.msra.mxu0 0.0
        %1858 = vmatprep.subr.mxu0 0.0
        %1859 = vmatpush1.msra.mxu0 0.0
        %1860 = vmatprep.subr.mxu0 0.0
        %1861 = vmatpush1.msra.mxu0 0.0
        %1862 = vmatprep.subr.mxu0 0.0
        %1863 = vmatpush1.msra.mxu0 0.0
        %1864 = vmatprep.subr.mxu0 0.0
        %1865 = vmatpush1.msra.mxu0 0.0
        %1866 = vmatprep.mubr.f32.mxu0 0.0
        %v1867 = vand.u32 %v1560, 4294901760
        %v1868 = vsub.f32 %v1560, %v1867
        %v1869 = vand.u32 %v1868, 4294901760
        %1870 = vmatmul.mubr.f32.gmra.mrb[0].mxu0 %v1869
        %v1871 = vpop.f32.mrb[0].mxu0
        %v1872 = vadd.f32 %v1797, %v1871
        %v1873 = vpop.f32.mrb[0].mxu0
        %1874 = vdwg.mxu0
        %1875 = vmatprep.subr.mxu0 0.0
        %v1876 = vand.u32 %v1556, 4294901760
        %v1877 = vsub.f32 %v1556, %v1876
        %v1878 = vand.u32 %v1877, 4294901760
        %1879 = vmatpush1.msra.mxu0 %v1878
        %1880 = vmatprep.subr.mxu0 0.0
        %v1881 = vand.u32 %v1564, 4294901760
        %v1882 = vsub.f32 %v1564, %v1881
        %v1883 = vand.u32 %v1882, 4294901760
        %1884 = vmatpush1.msra.mxu0 %v1883
        %1885 = vmatprep.subr.mxu0 0.0
        %1886 = vmatpush1.msra.mxu0 0.0
        %1887 = vmatprep.subr.mxu0 0.0
        %1888 = vmatpush1.msra.mxu0 0.0
        %1889 = vmatprep.subr.mxu0 0.0
        %1890 = vmatpush1.msra.mxu0 0.0
        %1891 = vmatprep.subr.mxu0 0.0
        %1892 = vmatpush1.msra.mxu0 0.0
        %1893 = vmatprep.subr.mxu0 0.0
        %1894 = vmatpush1.msra.mxu0 0.0
        %1895 = vmatprep.subr.mxu0 0.0
        %1896 = vmatpush1.msra.mxu0 0.0
        %1897 = vmatprep.subr.mxu0 0.0
        %1898 = vmatpush1.msra.mxu0 0.0
        %1899 = vmatprep.subr.mxu0 0.0
        %1900 = vmatpush1.msra.mxu0 0.0
        %1901 = vmatprep.subr.mxu0 0.0
        %1902 = vmatpush1.msra.mxu0 0.0
        %1903 = vmatprep.subr.mxu0 0.0
        %1904 = vmatpush1.msra.mxu0 0.0
        %1905 = vmatprep.subr.mxu0 0.0
        %1906 = vmatpush1.msra.mxu0 0.0
        %1907 = vmatprep.subr.mxu0 0.0
        %1908 = vmatpush1.msra.mxu0 0.0
        %1909 = vmatprep.subr.mxu0 0.0
        %1910 = vmatpush1.msra.mxu0 0.0
        %1911 = vmatprep.subr.mxu0 0.0
        %1912 = vmatpush1.msra.mxu0 0.0
        %1913 = vmatprep.subr.mxu0 0.0
        %1914 = vmatpush1.msra.mxu0 0.0
        %1915 = vmatprep.subr.mxu0 0.0
        %1916 = vmatpush1.msra.mxu0 0.0
        %1917 = vmatprep.subr.mxu0 0.0
        %1918 = vmatpush1.msra.mxu0 0.0
        %1919 = vmatprep.subr.mxu0 0.0
        %1920 = vmatpush1.msra.mxu0 0.0
        %1921 = vmatprep.subr.mxu0 0.0
        %1922 = vmatpush1.msra.mxu0 0.0
        %1923 = vmatprep.subr.mxu0 0.0
        %1924 = vmatpush1.msra.mxu0 0.0
        %1925 = vmatprep.subr.mxu0 0.0
        %1926 = vmatpush1.msra.mxu0 0.0
        %1927 = vmatprep.subr.mxu0 0.0
        %1928 = vmatpush1.msra.mxu0 0.0
        %1929 = vmatprep.subr.mxu0 0.0
        %1930 = vmatpush1.msra.mxu0 0.0
        %1931 = vmatprep.subr.mxu0 0.0
        %1932 = vmatpush1.msra.mxu0 0.0
        %1933 = vmatprep.subr.mxu0 0.0
        %1934 = vmatpush1.msra.mxu0 0.0
        %1935 = vmatprep.subr.mxu0 0.0
        %1936 = vmatpush1.msra.mxu0 0.0
        %1937 = vmatprep.subr.mxu0 0.0
        %1938 = vmatpush1.msra.mxu0 0.0
        %1939 = vmatprep.subr.mxu0 0.0
        %1940 = vmatpush1.msra.mxu0 0.0
        %1941 = vmatprep.subr.mxu0 0.0
        %1942 = vmatpush1.msra.mxu0 0.0
        %1943 = vmatprep.subr.mxu0 0.0
        %1944 = vmatpush1.msra.mxu0 0.0
        %1945 = vmatprep.mubr.f32.mxu0 0.0
        %v1946 = vand.u32 %v1560, 4294901760
        %1947 = vmatmul.mubr.f32.gmra.mrb[0].mxu0 %v1946
        %v1948 = vpop.f32.mrb[0].mxu0
        %v1949 = vadd.f32 %v1872, %v1948
        %v1950 = vpop.f32.mrb[0].mxu0
        %1951 = vdwg.mxu0
        %1952 = vmatprep.subr.mxu0 0.0
        %v1953 = vand.u32 %v1556, 4294901760
        %1954 = vmatpush1.msra.mxu0 %v1953
        %1955 = vmatprep.subr.mxu0 0.0
        %v1956 = vand.u32 %v1564, 4294901760
        %1957 = vmatpush1.msra.mxu0 %v1956
        %1958 = vmatprep.subr.mxu0 0.0
        %1959 = vmatpush1.msra.mxu0 0.0
        %1960 = vmatprep.subr.mxu0 0.0
        %1961 = vmatpush1.msra.mxu0 0.0
        %1962 = vmatprep.subr.mxu0 0.0
        %1963 = vmatpush1.msra.mxu0 0.0
        %1964 = vmatprep.subr.mxu0 0.0
        %1965 = vmatpush1.msra.mxu0 0.0
        %1966 = vmatprep.subr.mxu0 0.0
        %1967 = vmatpush1.msra.mxu0 0.0
        %1968 = vmatprep.subr.mxu0 0.0
        %1969 = vmatpush1.msra.mxu0 0.0
        %1970 = vmatprep.subr.mxu0 0.0
        %1971 = vmatpush1.msra.mxu0 0.0
        %1972 = vmatprep.subr.mxu0 0.0
        %1973 = vmatpush1.msra.mxu0 0.0
        %1974 = vmatprep.subr.mxu0 0.0
        %1975 = vmatpush1.msra.mxu0 0.0
        %1976 = vmatprep.subr.mxu0 0.0
        %1977 = vmatpush1.msra.mxu0 0.0
        %1978 = vmatprep.subr.mxu0 0.0
        %1979 = vmatpush1.msra.mxu0 0.0
        %1980 = vmatprep.subr.mxu0 0.0
        %1981 = vmatpush1.msra.mxu0 0.0
        %1982 = vmatprep.subr.mxu0 0.0
        %1983 = vmatpush1.msra.mxu0 0.0
        %1984 = vmatprep.subr.mxu0 0.0
        %1985 = vmatpush1.msra.mxu0 0.0
        %1986 = vmatprep.subr.mxu0 0.0
        %1987 = vmatpush1.msra.mxu0 0.0
        %1988 = vmatprep.subr.mxu0 0.0
        %1989 = vmatpush1.msra.mxu0 0.0
        %1990 = vmatprep.subr.mxu0 0.0
        %1991 = vmatpush1.msra.mxu0 0.0
        %1992 = vmatprep.subr.mxu0 0.0
        %1993 = vmatpush1.msra.mxu0 0.0
        %1994 = vmatprep.subr.mxu0 0.0
        %1995 = vmatpush1.msra.mxu0 0.0
        %1996 = vmatprep.subr.mxu0 0.0
        %1997 = vmatpush1.msra.mxu0 0.0
        %1998 = vmatprep.subr.mxu0 0.0
        %1999 = vmatpush1.msra.mxu0 0.0
        %2000 = vmatprep.subr.mxu0 0.0
        %2001 = vmatpush1.msra.mxu0 0.0
        %2002 = vmatprep.subr.mxu0 0.0
        %2003 = vmatpush1.msra.mxu0 0.0
        %2004 = vmatprep.subr.mxu0 0.0
        %2005 = vmatpush1.msra.mxu0 0.0
        %2006 = vmatprep.subr.mxu0 0.0
        %2007 = vmatpush1.msra.mxu0 0.0
        %2008 = vmatprep.subr.mxu0 0.0
        %2009 = vmatpush1.msra.mxu0 0.0
        %2010 = vmatprep.subr.mxu0 0.0
        %2011 = vmatpush1.msra.mxu0 0.0
        %2012 = vmatprep.subr.mxu0 0.0
        %2013 = vmatpush1.msra.mxu0 0.0
        %2014 = vmatprep.subr.mxu0 0.0
        %2015 = vmatpush1.msra.mxu0 0.0
        %2016 = vmatprep.subr.mxu0 0.0
        %2017 = vmatpush1.msra.mxu0 0.0
        %2018 = vmatprep.mubr.f32.mxu0 0.0
        %v2019 = vand.u32 %v1560, 4294901760
        %2020 = vmatmul.mubr.f32.gmra.mrb[0].mxu0 %v2019
        %v2021 = vpop.f32.mrb[0].mxu0
        %v2022 = vadd.f32 %v1949, %v2021
        %v2023 = vpop.f32.mrb[0].mxu0
        %2024 = vdwg.mxu0
        %vm2025 = vcmask 64512
        %2026 = vst.msk [vmem:[%s161] sm:$0xff] %vm2025, %v2022
        %s2027 = sand.u32 %s93, 1
        %s2028 = scalar_lea.sflag [#allocation3], %s2027
        %s2029 = sand.u32 %s93, 1
        %s2030 = smul.addr %s2029, 8
        %s2031 = scalar_lea.vmem [#allocation2], %s2030
        // Predicated region
        $region33: #{conv_encoder_forward.1} parent=31 // pred_check
          %p2032 = pneg %p103
        $region34: #{conv_encoder_forward.1} parent=31 // pred_check_branch
          %2034 = sbr.rel (%p2032) target = $region36
        $region35: #{conv_encoder_forward.1} parent=31 // pred_region
          %s2036 = ssub.s32 128, 128
          %2037 = vsyncadd %s2028, %s2036
          %s2038 = smul.addr %s17, 128
          %s2039 = scalar_lea.hbm %s3, %s2038
          %s2041 = sshll.u32 %s2031, 4
          %s2042 = int_to_ptr.vmem [resolvable:$true] %s2041
          %2044 = dma.vmem_to_hbm [thread:$0]  %s2042, 128, %s2039, %s2028
        $region36: #{conv_encoder_forward.1} parent=31 // pred_fallthru
          _
      $region32: #{conv_encoder_forward.1} parent=5 // pred_fallthru
        _
      %p2045 = scmp.le.s32.totalorder 2, %s12
      // Predicated region
      $region37: #{conv_encoder_forward.1} parent=5 // pred_check
        %p2046 = pneg %p2045
      $region38: #{conv_encoder_forward.1} parent=5 // pred_check_branch
        %2048 = sbr.rel (%p2046) target = $region40
      $region39: #{conv_encoder_forward.1} parent=5 // pred_region
        %s2049 = ssub.s32 %s12, 2
        // Predicated region
        $region41: #{conv_encoder_forward.1} parent=39 // pred_check
          %p2050 = pneg %p109
        $region42: #{conv_encoder_forward.1} parent=39 // pred_check_branch
          %2052 = sbr.rel (%p2050) target = $region44
        $region43: #{conv_encoder_forward.1} parent=39 // pred_region
          %s2053 = sand.u32 %s94, 1
          %s2054 = scalar_lea.sflag [#allocation3], %s2053
          %s2055 = sand.u32 %s94, 1
          %s2056 = smul.addr %s2055, 8
          %s2057 = scalar_lea.vmem [#allocation2], %s2056
          %2058 = dma.done %s2054, 128
        $region44: #{conv_encoder_forward.1} parent=39 // pred_fallthru
          _
      $region40: #{conv_encoder_forward.1} parent=5 // pred_fallthru
        _
    $region6: #{conv_encoder_forward.1} parent=1 // loop_footer
      %s16 = sadd.s32 1, %s12
    $region7: #{conv_encoder_forward.1} parent=1 // loop_footer_branch
      %11 = sbr.rel target = $region3
    $region8: #{conv_encoder_forward.1} parent=1 // loop_exit
      _
    %2059 = vsyncpa [#allocation3], 1
    %s2060 = scalar_lea.sflag [#allocation3], 1
    %2061 = vsyncpa %s2060, 1

</llo_original>
